<compile_context>
chip_gen: v7x
topology: tpu7x:2x2x1
jax: 0.10.0
libtpu: 0.0.40
codegen_flags: <defaults>
</compile_context>

<pallas_src>
import math
import functools

import jax
import jax.numpy as jnp
from jax.experimental import pallas as pl
from jax.experimental.pallas import tpu as pltpu


# ----------------------------- config -------------------------------------
class Config:
    n_embd = 32            # = n_heads * head_dim
    int_size = 64          # MLP intermediate size
    n_heads = 4
    n_kv_heads = 2
    head_dim = 8
    block_size = 8
    rope_theta = 10000.0
    rms_eps = 1e-5


# ----------------------------- Pallas kernel -------------------------------
def _rmsnorm(x, w, eps):
    ms = jnp.mean(x * x, axis=-1, keepdims=True)
    return x * jax.lax.rsqrt(ms + eps) * w


def decoder_layer_kernel(x_ref, w_in_ref, w_post_ref,
                         wqe_ref, wqo_ref, wke_ref, wko_ref, wv_ref, wo_ref,
                         wg_ref, wu_ref, wd_ref,
                         cos_q_ref, sin_q_ref, cos_k_ref, sin_k_ref,
                         mask_ref, o_ref,
                         *, n_heads, n_kv_heads, head_dim, eps):
    n_rep = n_heads // n_kv_heads
    half = head_dim // 2

    x = x_ref[...]                                  # (T, C) -- one batch element

    # ---- input RMSNorm ----
    h = _rmsnorm(x, w_in_ref[...], eps)

    # ---- fused, lane-dense Q/K/V projections (1/sqrt(hd) baked into Wq) ----
    qe = jnp.dot(h, wqe_ref[...], preferred_element_type=jnp.float32)  # (T, H*half)
    qo = jnp.dot(h, wqo_ref[...], preferred_element_type=jnp.float32)  # (T, H*half)
    ke = jnp.dot(h, wke_ref[...], preferred_element_type=jnp.float32)  # (T, G*half)
    ko = jnp.dot(h, wko_ref[...], preferred_element_type=jnp.float32)  # (T, G*half)
    v2 = jnp.dot(h, wv_ref[...], preferred_element_type=jnp.float32)   # (T, G*hd)

    # ---- RoPE: pure element-wise (cos/sin pre-tiled to projection width) ----
    cq, sq = cos_q_ref[...], sin_q_ref[...]
    ck, sk = cos_k_ref[...], sin_k_ref[...]
    qe_r = qe * cq - qo * sq
    qo_r = qo * cq + qe * sq
    ke_r = ke * ck - ko * sk
    ko_r = ko * ck + ke * sk

    mask = mask_ref[...]                            # (T, T)

    # ---- per-head attention (static unrolled loop; GQA via kv-group slices) --
    # TODO(synk): at real sizes make heads / KV blocks grid axes with an
    #             online-softmax (flash) KV loop and bf16 matmul operands.
    outs = []
    for h_idx in range(n_heads):
        grp = h_idx // n_rep
        qe_h = qe_r[:, h_idx * half:(h_idx + 1) * half]          # (T, half)
        qo_h = qo_r[:, h_idx * half:(h_idx + 1) * half]
        ke_g = ke_r[:, grp * half:(grp + 1) * half]              # (T, half)
        ko_g = ko_r[:, grp * half:(grp + 1) * half]
        v_g = v2[:, grp * head_dim:(grp + 1) * head_dim]         # (T, hd)

        s = (jnp.einsum('tp,sp->ts', qe_h, ke_g,
                        preferred_element_type=jnp.float32)
             + jnp.einsum('tp,sp->ts', qo_h, ko_g,
                          preferred_element_type=jnp.float32))   # (T, T)
        s = s + mask
        s = s - jnp.max(s, axis=-1, keepdims=True)
        p = jnp.exp(s)
        l = jnp.sum(p, axis=-1, keepdims=True)                   # (T, 1)
        o_h = jnp.dot(p, v_g, preferred_element_type=jnp.float32)  # (T, hd)
        # deferred softmax normalization (T*hd scalings instead of T*T)
        outs.append(o_h * pl.reciprocal(l, approx=True))

    # ---- single fused output projection + residual ----
    o_all = jnp.concatenate(outs, axis=-1)                       # (T, H*hd)
    x = x + jnp.dot(o_all, wo_ref[...], preferred_element_type=jnp.float32)

    # ---- MLP block + residual ----
    h2 = _rmsnorm(x, w_post_ref[...], eps)
    g_ = jnp.dot(h2, wg_ref[...], preferred_element_type=jnp.float32)
    u_ = jnp.dot(h2, wu_ref[...], preferred_element_type=jnp.float32)
    m_ = jnp.dot(jax.nn.silu(g_) * u_, wd_ref[...],
                 preferred_element_type=jnp.float32)
    o_ref[...] = x + m_


# ----------------------------- host-side prep (run once) --------------------
def prepare_decoder_layer(params, freqs_cis, cfg):
    """One-time weight / rotary preparation, hoisted out of the forward call."""
    C = cfg.n_embd
    H, G, hd = cfg.n_heads, cfg.n_kv_heads, cfg.head_dim
    half = hd // 2

    def split_even_odd(w, n_h, scale=1.0):
        # torch Linear weight (out, in) -> (in, out); gather even / odd feature
        # columns, head-major: column (head h, pair p) <- original feature h*hd + 2p(+1).
        w_t = w.T * scale                                         # (C_in, n_h*hd)
        idx = (jnp.arange(n_h)[:, None] * hd
               + 2 * jnp.arange(half)[None, :]).reshape(-1)
        return w_t[:, idx], w_t[:, idx + 1]

    wqe, wqo = split_even_odd(params["wq"], H, scale=1.0 / math.sqrt(hd))
    wke, wko = split_even_odd(params["wk"], G)

    cos = jnp.real(freqs_cis).astype(jnp.float32)                 # (T, half)
    sin = jnp.imag(freqs_cis).astype(jnp.float32)

    # TODO(synk): at real sizes cast weights to bf16 here (kept f32 for the
    #             strict f32 reference comparison in this test).
    return {
        "w_in": params["attn_norm_w"].reshape(1, C),
        "w_post": params["mlp_norm_w"].reshape(1, C),
        "wqe": wqe, "wqo": wqo, "wke": wke, "wko": wko,
        "wv": params["wv"].T, "wo": params["wo"].T,
        "wg": params["wg"].T, "wu": params["wu"].T, "wd": params["wd"].T,
        "cos_q": jnp.tile(cos, (1, H)), "sin_q": jnp.tile(sin, (1, H)),
        "cos_k": jnp.tile(cos, (1, G)), "sin_k": jnp.tile(sin, (1, G)),
    }


# ----------------------------- wrapper --------------------------------------
def llama_decoder_layer(x, attention_mask, prep, cfg):
    """x: (B, T, C) f32; attention_mask: (T, T) f32; prep: prepare_decoder_layer output."""
    B, T, C = x.shape
    H, G, hd = cfg.n_heads, cfg.n_kv_heads, cfg.head_dim

    kernel = functools.partial(
        decoder_layer_kernel,
        n_heads=H, n_kv_heads=G, head_dim=hd, eps=cfg.rms_eps)

    w_names = ["w_in", "w_post", "wqe", "wqo", "wke", "wko", "wv", "wo",
               "wg", "wu", "wd", "cos_q", "sin_q", "cos_k", "sin_k"]
    w_args = [prep[n] for n in w_names]
    w_specs = [pl.BlockSpec(a.shape, lambda b: (0, 0)) for a in w_args]

    mask = attention_mask.astype(jnp.float32)                     # (T, T)

    out = pl.pallas_call(
        kernel,
        grid=(B,),
        out_shape=jax.ShapeDtypeStruct((B, T, C), jnp.float32),
        in_specs=([pl.BlockSpec((None, T, C), lambda b: (b, 0, 0))]
                  + w_specs
                  + [pl.BlockSpec((T, T), lambda b: (0, 0))]),
        out_specs=pl.BlockSpec((None, T, C), lambda b: (b, 0, 0)),
        compiler_params=pltpu.CompilerParams(
            dimension_semantics=("parallel",)),
    )(x, *w_args, mask)
    return out


# ----------------------------- pure-JAX reference ----------------------------
def reference_decoder_layer(x, freqs_cis, attention_mask, params, cfg):
    B, T, C = x.shape
    H, Hkv, hd = cfg.n_heads, cfg.n_kv_heads, cfg.head_dim
    n_rep = H // Hkv
    eps = cfg.rms_eps

    def rmsnorm(v, w):
        return v * jax.lax.rsqrt(jnp.mean(v * v, axis=-1, keepdims=True) + eps) * w

    def rope(t):  # (B, T, Hx, hd), interleaved pairs (torch view_as_complex semantics)
        tc = t[..., 0::2] + 1j * t[..., 1::2]
        tc = tc * freqs_cis[None, :, None, :]
        return jnp.stack([jnp.real(tc), jnp.imag(tc)], axis=-1).reshape(t.shape)

    h = rmsnorm(x, params["attn_norm_w"])
    q = (h @ params["wq"].T).reshape(B, T, H, hd)
    k = (h @ params["wk"].T).reshape(B, T, Hkv, hd)
    v = (h @ params["wv"].T).reshape(B, T, Hkv, hd)
    q, k = rope(q), rope(k)
    k = jnp.repeat(k, n_rep, axis=2)
    v = jnp.repeat(v, n_rep, axis=2)
    q, k, v = (a.transpose(0, 2, 1, 3) for a in (q, k, v))
    s = q @ k.transpose(0, 1, 3, 2) / math.sqrt(hd) + attention_mask[None, None]
    p = jax.nn.softmax(s, axis=-1)
    attn = (p @ v).transpose(0, 2, 1, 3).reshape(B, T, C)
    x = x + attn @ params["wo"].T
    h2 = rmsnorm(x, params["mlp_norm_w"])
    mlp = (jax.nn.silu(h2 @ params["wg"].T) * (h2 @ params["wu"].T)) @ params["wd"].T
    return x + mlp


# ----------------------------- setup helpers --------------------------------
def precompute_freqs_cis(cfg, T):
    hd = cfg.head_dim
    freqs = 1.0 / (cfg.rope_theta ** (jnp.arange(0, hd, 2, dtype=jnp.float32) / hd))
    t = jnp.arange(T, dtype=jnp.float32)
    ang = jnp.outer(t, freqs)                       # (T, hd/2)
    return jnp.cos(ang) + 1j * jnp.sin(ang)         # complex64


def init_params(cfg, key):
    C, I = cfg.n_embd, cfg.int_size
    Ckv = cfg.n_kv_heads * cfg.head_dim
    ks = jax.random.split(key, 9)
    s = 0.05
    return {
        # torch nn.Linear convention: weight is (out_features, in_features)
        "wq": jax.random.normal(ks[0], (C, C), jnp.float32) * s,
        "wk": jax.random.normal(ks[1], (Ckv, C), jnp.float32) * s,
        "wv": jax.random.normal(ks[2], (Ckv, C), jnp.float32) * s,
        "wo": jax.random.normal(ks[3], (C, C), jnp.float32) * s,
        "wg": jax.random.normal(ks[4], (I, C), jnp.float32) * s,
        "wu": jax.random.normal(ks[5], (I, C), jnp.float32) * s,
        "wd": jax.random.normal(ks[6], (C, I), jnp.float32) * s,
        "attn_norm_w": 1.0 + 0.1 * jax.random.normal(ks[7], (C,), jnp.float32),
        "mlp_norm_w": 1.0 + 0.1 * jax.random.normal(ks[8], (C,), jnp.float32),
    }


# ----------------------------- main ------------------------------------------
if __name__ == "__main__":
    cfg = Config()
    key = jax.random.PRNGKey(0)
    pkey, xkey = jax.random.split(key)
    params = init_params(cfg, pkey)

    B, T = 2, cfg.block_size
    x = jax.random.normal(xkey, (B, T, cfg.n_embd), jnp.float32)
    freqs_cis = precompute_freqs_cis(cfg, T)
    i = jnp.arange(T)
    attention_mask = jnp.where(i[:, None] >= i[None, :], 0.0, -jnp.inf).astype(jnp.float32)

    # One-time host-side weight/rotary preparation (hoisted out of the forward).
    prep = jax.tree_util.tree_map(jax.block_until_ready,
                                  prepare_decoder_layer(params, freqs_cis, cfg))

    out = llama_decoder_layer(x, attention_mask, prep, cfg)
    out = jax.block_until_ready(out)

    ref = jax.block_until_ready(
        reference_decoder_layer(x, freqs_cis, attention_mask, params, cfg))

    assert out.shape == (B, T, cfg.n_embd)
    assert jnp.allclose(out, ref, atol=2e-3, rtol=2e-3), "mismatch vs reference"
    print("KERNEL_OK")
</pallas_src>

<mosaic_0001>
module attributes {stable_mosaic.version = 11 : i64} {
  func.func @decoder_layer_kernel(%arg0: i32, %arg1: memref<1x8x32xf32, #tpu.memory_space<vmem>>, %arg2: memref<1x32xf32, #tpu.memory_space<vmem>>, %arg3: memref<1x32xf32, #tpu.memory_space<vmem>>, %arg4: memref<32x16xf32, #tpu.memory_space<vmem>>, %arg5: memref<32x16xf32, #tpu.memory_space<vmem>>, %arg6: memref<32x8xf32, #tpu.memory_space<vmem>>, %arg7: memref<32x8xf32, #tpu.memory_space<vmem>>, %arg8: memref<32x16xf32, #tpu.memory_space<vmem>>, %arg9: memref<32x32xf32, #tpu.memory_space<vmem>>, %arg10: memref<32x64xf32, #tpu.memory_space<vmem>>, %arg11: memref<32x64xf32, #tpu.memory_space<vmem>>, %arg12: memref<64x32xf32, #tpu.memory_space<vmem>>, %arg13: memref<8x16xf32, #tpu.memory_space<vmem>>, %arg14: memref<8x16xf32, #tpu.memory_space<vmem>>, %arg15: memref<8x8xf32, #tpu.memory_space<vmem>>, %arg16: memref<8x8xf32, #tpu.memory_space<vmem>>, %arg17: memref<8x8xf32, #tpu.memory_space<vmem>>, %arg18: memref<1x8x32xf32, #tpu.memory_space<vmem>>) attributes {dimension_semantics = [#tpu.dimension_semantics<parallel>], iteration_bounds = array<i64: 2>, scalar_prefetch = 0 : i64, scratch_operands = 0 : i64, tpu.core_type = #tpu.core_type<tc>, window_params = [{transform_indices = @transform_0, window_bounds = array<i64: 1, 8, 32>}, {pipeline_mode = #tpu.pipeline_mode<synchronous>, transform_indices = @transform_1, window_bounds = array<i64: 1, 32>}, {pipeline_mode = #tpu.pipeline_mode<synchronous>, transform_indices = @transform_2, window_bounds = array<i64: 1, 32>}, {pipeline_mode = #tpu.pipeline_mode<synchronous>, transform_indices = @transform_3, window_bounds = array<i64: 32, 16>}, {pipeline_mode = #tpu.pipeline_mode<synchronous>, transform_indices = @transform_4, window_bounds = array<i64: 32, 16>}, {pipeline_mode = #tpu.pipeline_mode<synchronous>, transform_indices = @transform_5, window_bounds = array<i64: 32, 8>}, {pipeline_mode = #tpu.pipeline_mode<synchronous>, transform_indices = @transform_6, window_bounds = array<i64: 32, 8>}, {pipeline_mode = #tpu.pipeline_mode<synchronous>, transform_indices = @transform_7, window_bounds = array<i64: 32, 16>}, {pipeline_mode = #tpu.pipeline_mode<synchronous>, transform_indices = @transform_8, window_bounds = array<i64: 32, 32>}, {pipeline_mode = #tpu.pipeline_mode<synchronous>, transform_indices = @transform_9, window_bounds = array<i64: 32, 64>}, {pipeline_mode = #tpu.pipeline_mode<synchronous>, transform_indices = @transform_10, window_bounds = array<i64: 32, 64>}, {pipeline_mode = #tpu.pipeline_mode<synchronous>, transform_indices = @transform_11, window_bounds = array<i64: 64, 32>}, {pipeline_mode = #tpu.pipeline_mode<synchronous>, transform_indices = @transform_12, window_bounds = array<i64: 8, 16>}, {pipeline_mode = #tpu.pipeline_mode<synchronous>, transform_indices = @transform_13, window_bounds = array<i64: 8, 16>}, {pipeline_mode = #tpu.pipeline_mode<synchronous>, transform_indices = @transform_14, window_bounds = array<i64: 8, 8>}, {pipeline_mode = #tpu.pipeline_mode<synchronous>, transform_indices = @transform_15, window_bounds = array<i64: 8, 8>}, {pipeline_mode = #tpu.pipeline_mode<synchronous>, transform_indices = @transform_16, window_bounds = array<i64: 8, 8>}, {transform_indices = @transform_17, window_bounds = array<i64: 1, 8, 32>}]} {
    %c0 = arith.constant 0 : index
    %c0_0 = arith.constant 0 : index
    %c0_1 = arith.constant 0 : index
    %0 = vector.load %arg1[%c0, %c0_0, %c0_1] : memref<1x8x32xf32, #tpu.memory_space<vmem>>, vector<1x8x32xf32>
    %1 = vector.shape_cast %0 : vector<1x8x32xf32> to vector<8x32xf32>
    %c0_2 = arith.constant 0 : index
    %c0_3 = arith.constant 0 : index
    %2 = vector.load %arg2[%c0_2, %c0_3] : memref<1x32xf32, #tpu.memory_space<vmem>>, vector<1x32xf32>
    %3 = arith.mulf %1, %1 : vector<8x32xf32>
    %cst = arith.constant dense<0.000000e+00> : vector<8xf32>
    %4 = vector.multi_reduction <add>, %3, %cst [1] : vector<8x32xf32> to vector<8xf32>
    %5 = vector.shape_cast %4 : vector<8xf32> to vector<8x1xf32>
    %cst_4 = arith.constant 3.200000e+01 : f32
    %6 = vector.broadcast %cst_4 : f32 to vector<8x1xf32>
    %7 = arith.divf %5, %6 : vector<8x1xf32>
    %cst_5 = arith.constant 9.99999974E-6 : f32
    %8 = vector.broadcast %cst_5 : f32 to vector<8x1xf32>
    %9 = arith.addf %7, %8 : vector<8x1xf32>
    %10 = math.rsqrt %9 : vector<8x1xf32>
    %11 = vector.broadcast %10 : vector<8x1xf32> to vector<8x32xf32>
    %12 = arith.mulf %1, %11 : vector<8x32xf32>
    %13 = vector.broadcast %2 : vector<1x32xf32> to vector<8x32xf32>
    %14 = arith.mulf %12, %13 : vector<8x32xf32>
    %c0_6 = arith.constant 0 : index
    %c0_7 = arith.constant 0 : index
    %15 = vector.load %arg4[%c0_6, %c0_7] : memref<32x16xf32, #tpu.memory_space<vmem>>, vector<32x16xf32>
    %cst_8 = arith.constant dense<0.000000e+00> : vector<8x16xf32>
    %16 = tpu.matmul %14, %15, %cst_8 {dimension_numbers = #tpu.dot_dimension_numbers<[1], [0], [0], [1], [0, 0, 1, 1], [], []>} : vector<8x32xf32>, vector<32x16xf32>, vector<8x16xf32> -> vector<8x16xf32>
    %c0_9 = arith.constant 0 : index
    %c0_10 = arith.constant 0 : index
    %17 = vector.load %arg5[%c0_9, %c0_10] : memref<32x16xf32, #tpu.memory_space<vmem>>, vector<32x16xf32>
    %cst_11 = arith.constant dense<0.000000e+00> : vector<8x16xf32>
    %18 = tpu.matmul %14, %17, %cst_11 {dimension_numbers = #tpu.dot_dimension_numbers<[1], [0], [0], [1], [0, 0, 1, 1], [], []>} : vector<8x32xf32>, vector<32x16xf32>, vector<8x16xf32> -> vector<8x16xf32>
    %c0_12 = arith.constant 0 : index
    %c0_13 = arith.constant 0 : index
    %19 = vector.load %arg6[%c0_12, %c0_13] : memref<32x8xf32, #tpu.memory_space<vmem>>, vector<32x8xf32>
    %cst_14 = arith.constant dense<0.000000e+00> : vector<8x8xf32>
    %20 = tpu.matmul %14, %19, %cst_14 {dimension_numbers = #tpu.dot_dimension_numbers<[1], [0], [0], [1], [0, 0, 1, 1], [], []>} : vector<8x32xf32>, vector<32x8xf32>, vector<8x8xf32> -> vector<8x8xf32>
    %c0_15 = arith.constant 0 : index
    %c0_16 = arith.constant 0 : index
    %21 = vector.load %arg7[%c0_15, %c0_16] : memref<32x8xf32, #tpu.memory_space<vmem>>, vector<32x8xf32>
    %cst_17 = arith.constant dense<0.000000e+00> : vector<8x8xf32>
    %22 = tpu.matmul %14, %21, %cst_17 {dimension_numbers = #tpu.dot_dimension_numbers<[1], [0], [0], [1], [0, 0, 1, 1], [], []>} : vector<8x32xf32>, vector<32x8xf32>, vector<8x8xf32> -> vector<8x8xf32>
    %c0_18 = arith.constant 0 : index
    %c0_19 = arith.constant 0 : index
    %23 = vector.load %arg8[%c0_18, %c0_19] : memref<32x16xf32, #tpu.memory_space<vmem>>, vector<32x16xf32>
    %cst_20 = arith.constant dense<0.000000e+00> : vector<8x16xf32>
    %24 = tpu.matmul %14, %23, %cst_20 {dimension_numbers = #tpu.dot_dimension_numbers<[1], [0], [0], [1], [0, 0, 1, 1], [], []>} : vector<8x32xf32>, vector<32x16xf32>, vector<8x16xf32> -> vector<8x16xf32>
    %c0_21 = arith.constant 0 : index
    %c0_22 = arith.constant 0 : index
    %25 = vector.load %arg13[%c0_21, %c0_22] : memref<8x16xf32, #tpu.memory_space<vmem>>, vector<8x16xf32>
    %c0_23 = arith.constant 0 : index
    %c0_24 = arith.constant 0 : index
    %26 = vector.load %arg14[%c0_23, %c0_24] : memref<8x16xf32, #tpu.memory_space<vmem>>, vector<8x16xf32>
    %c0_25 = arith.constant 0 : index
    %c0_26 = arith.constant 0 : index
    %27 = vector.load %arg15[%c0_25, %c0_26] : memref<8x8xf32, #tpu.memory_space<vmem>>, vector<8x8xf32>
    %c0_27 = arith.constant 0 : index
    %c0_28 = arith.constant 0 : index
    %28 = vector.load %arg16[%c0_27, %c0_28] : memref<8x8xf32, #tpu.memory_space<vmem>>, vector<8x8xf32>
    %29 = arith.mulf %16, %25 : vector<8x16xf32>
    %30 = arith.mulf %18, %26 : vector<8x16xf32>
    %31 = arith.subf %29, %30 : vector<8x16xf32>
    %32 = arith.mulf %18, %25 : vector<8x16xf32>
    %33 = arith.mulf %16, %26 : vector<8x16xf32>
    %34 = arith.addf %32, %33 : vector<8x16xf32>
    %35 = arith.mulf %20, %27 : vector<8x8xf32>
    %36 = arith.mulf %22, %28 : vector<8x8xf32>
    %37 = arith.subf %35, %36 : vector<8x8xf32>
    %38 = arith.mulf %22, %27 : vector<8x8xf32>
    %39 = arith.mulf %20, %28 : vector<8x8xf32>
    %40 = arith.addf %38, %39 : vector<8x8xf32>
    %c0_29 = arith.constant 0 : index
    %c0_30 = arith.constant 0 : index
    %41 = vector.load %arg17[%c0_29, %c0_30] : memref<8x8xf32, #tpu.memory_space<vmem>>, vector<8x8xf32>
    %42 = vector.extract_strided_slice %31 {offsets = [0, 0], sizes = [8, 4], strides = [1, 1]} : vector<8x16xf32> to vector<8x4xf32>
    %43 = vector.extract_strided_slice %34 {offsets = [0, 0], sizes = [8, 4], strides = [1, 1]} : vector<8x16xf32> to vector<8x4xf32>
    %44 = vector.extract_strided_slice %37 {offsets = [0, 0], sizes = [8, 4], strides = [1, 1]} : vector<8x8xf32> to vector<8x4xf32>
    %45 = vector.extract_strided_slice %40 {offsets = [0, 0], sizes = [8, 4], strides = [1, 1]} : vector<8x8xf32> to vector<8x4xf32>
    %46 = vector.extract_strided_slice %24 {offsets = [0, 0], sizes = [8, 8], strides = [1, 1]} : vector<8x16xf32> to vector<8x8xf32>
    "tpu.trace_start"() <{level = 10 : i32, message = "tp,sp->ts"}> : () -> ()
    %cst_31 = arith.constant dense<0.000000e+00> : vector<8x8xf32>
    %47 = tpu.matmul %42, %44, %cst_31 {dimension_numbers = #tpu.dot_dimension_numbers<[1], [1], [0], [0], [0, 0, 1, 0], [], []>} : vector<8x4xf32>, vector<8x4xf32>, vector<8x8xf32> -> vector<8x8xf32>
    %cst_32 = arith.constant dense<0.000000e+00> : vector<8x8xf32>
    %48 = tpu.matmul %43, %45, %cst_32 {dimension_numbers = #tpu.dot_dimension_numbers<[1], [1], [0], [0], [0, 0, 1, 0], [], []>} : vector<8x4xf32>, vector<8x4xf32>, vector<8x8xf32> -> vector<8x8xf32>
    "tpu.trace_stop"() : () -> ()
    %49 = arith.addf %47, %48 : vector<8x8xf32>
    %50 = arith.addf %49, %41 : vector<8x8xf32>
    %cst_33 = arith.constant dense<0xFF800000> : vector<8xf32>
    %51 = vector.multi_reduction <maximumf>, %50, %cst_33 [1] : vector<8x8xf32> to vector<8xf32>
    %52 = vector.shape_cast %51 : vector<8xf32> to vector<8x1xf32>
    %53 = vector.broadcast %52 : vector<8x1xf32> to vector<8x8xf32>
    %54 = arith.subf %50, %53 : vector<8x8xf32>
    %55 = math.exp %54 : vector<8x8xf32>
    %cst_34 = arith.constant dense<0.000000e+00> : vector<8xf32>
    %56 = vector.multi_reduction <add>, %55, %cst_34 [1] : vector<8x8xf32> to vector<8xf32>
    %57 = vector.shape_cast %56 : vector<8xf32> to vector<8x1xf32>
    %cst_35 = arith.constant dense<0.000000e+00> : vector<8x8xf32>
    %58 = tpu.matmul %55, %46, %cst_35 {dimension_numbers = #tpu.dot_dimension_numbers<[1], [0], [0], [1], [0, 0, 1, 1], [], []>} : vector<8x8xf32>, vector<8x8xf32>, vector<8x8xf32> -> vector<8x8xf32>
    %59 = tpu.reciprocal %57 {approx = true} : vector<8x1xf32> -> vector<8x1xf32>
    %60 = vector.broadcast %59 : vector<8x1xf32> to vector<8x8xf32>
    %61 = arith.mulf %58, %60 : vector<8x8xf32>
    %62 = vector.extract_strided_slice %31 {offsets = [0, 4], sizes = [8, 4], strides = [1, 1]} : vector<8x16xf32> to vector<8x4xf32>
    %63 = vector.extract_strided_slice %34 {offsets = [0, 4], sizes = [8, 4], strides = [1, 1]} : vector<8x16xf32> to vector<8x4xf32>
    %64 = vector.extract_strided_slice %37 {offsets = [0, 0], sizes = [8, 4], strides = [1, 1]} : vector<8x8xf32> to vector<8x4xf32>
    %65 = vector.extract_strided_slice %40 {offsets = [0, 0], sizes = [8, 4], strides = [1, 1]} : vector<8x8xf32> to vector<8x4xf32>
    %66 = vector.extract_strided_slice %24 {offsets = [0, 0], sizes = [8, 8], strides = [1, 1]} : vector<8x16xf32> to vector<8x8xf32>
    "tpu.trace_start"() <{level = 10 : i32, message = "tp,sp->ts"}> : () -> ()
    %cst_36 = arith.constant dense<0.000000e+00> : vector<8x8xf32>
    %67 = tpu.matmul %62, %64, %cst_36 {dimension_numbers = #tpu.dot_dimension_numbers<[1], [1], [0], [0], [0, 0, 1, 0], [], []>} : vector<8x4xf32>, vector<8x4xf32>, vector<8x8xf32> -> vector<8x8xf32>
    %cst_37 = arith.constant dense<0.000000e+00> : vector<8x8xf32>
    %68 = tpu.matmul %63, %65, %cst_37 {dimension_numbers = #tpu.dot_dimension_numbers<[1], [1], [0], [0], [0, 0, 1, 0], [], []>} : vector<8x4xf32>, vector<8x4xf32>, vector<8x8xf32> -> vector<8x8xf32>
    "tpu.trace_stop"() : () -> ()
    %69 = arith.addf %67, %68 : vector<8x8xf32>
    %70 = arith.addf %69, %41 : vector<8x8xf32>
    %cst_38 = arith.constant dense<0xFF800000> : vector<8xf32>
    %71 = vector.multi_reduction <maximumf>, %70, %cst_38 [1] : vector<8x8xf32> to vector<8xf32>
    %72 = vector.shape_cast %71 : vector<8xf32> to vector<8x1xf32>
    %73 = vector.broadcast %72 : vector<8x1xf32> to vector<8x8xf32>
    %74 = arith.subf %70, %73 : vector<8x8xf32>
    %75 = math.exp %74 : vector<8x8xf32>
    %cst_39 = arith.constant dense<0.000000e+00> : vector<8xf32>
    %76 = vector.multi_reduction <add>, %75, %cst_39 [1] : vector<8x8xf32> to vector<8xf32>
    %77 = vector.shape_cast %76 : vector<8xf32> to vector<8x1xf32>
    %cst_40 = arith.constant dense<0.000000e+00> : vector<8x8xf32>
    %78 = tpu.matmul %75, %66, %cst_40 {dimension_numbers = #tpu.dot_dimension_numbers<[1], [0], [0], [1], [0, 0, 1, 1], [], []>} : vector<8x8xf32>, vector<8x8xf32>, vector<8x8xf32> -> vector<8x8xf32>
    %79 = tpu.reciprocal %77 {approx = true} : vector<8x1xf32> -> vector<8x1xf32>
    %80 = vector.broadcast %79 : vector<8x1xf32> to vector<8x8xf32>
    %81 = arith.mulf %78, %80 : vector<8x8xf32>
    %82 = vector.extract_strided_slice %31 {offsets = [0, 8], sizes = [8, 4], strides = [1, 1]} : vector<8x16xf32> to vector<8x4xf32>
    %83 = vector.extract_strided_slice %34 {offsets = [0, 8], sizes = [8, 4], strides = [1, 1]} : vector<8x16xf32> to vector<8x4xf32>
    %84 = vector.extract_strided_slice %37 {offsets = [0, 4], sizes = [8, 4], strides = [1, 1]} : vector<8x8xf32> to vector<8x4xf32>
    %85 = vector.extract_strided_slice %40 {offsets = [0, 4], sizes = [8, 4], strides = [1, 1]} : vector<8x8xf32> to vector<8x4xf32>
    %86 = vector.extract_strided_slice %24 {offsets = [0, 8], sizes = [8, 8], strides = [1, 1]} : vector<8x16xf32> to vector<8x8xf32>
    "tpu.trace_start"() <{level = 10 : i32, message = "tp,sp->ts"}> : () -> ()
    %cst_41 = arith.constant dense<0.000000e+00> : vector<8x8xf32>
    %87 = tpu.matmul %82, %84, %cst_41 {dimension_numbers = #tpu.dot_dimension_numbers<[1], [1], [0], [0], [0, 0, 1, 0], [], []>} : vector<8x4xf32>, vector<8x4xf32>, vector<8x8xf32> -> vector<8x8xf32>
    %cst_42 = arith.constant dense<0.000000e+00> : vector<8x8xf32>
    %88 = tpu.matmul %83, %85, %cst_42 {dimension_numbers = #tpu.dot_dimension_numbers<[1], [1], [0], [0], [0, 0, 1, 0], [], []>} : vector<8x4xf32>, vector<8x4xf32>, vector<8x8xf32> -> vector<8x8xf32>
    "tpu.trace_stop"() : () -> ()
    %89 = arith.addf %87, %88 : vector<8x8xf32>
    %90 = arith.addf %89, %41 : vector<8x8xf32>
    %cst_43 = arith.constant dense<0xFF800000> : vector<8xf32>
    %91 = vector.multi_reduction <maximumf>, %90, %cst_43 [1] : vector<8x8xf32> to vector<8xf32>
    %92 = vector.shape_cast %91 : vector<8xf32> to vector<8x1xf32>
    %93 = vector.broadcast %92 : vector<8x1xf32> to vector<8x8xf32>
    %94 = arith.subf %90, %93 : vector<8x8xf32>
    %95 = math.exp %94 : vector<8x8xf32>
    %cst_44 = arith.constant dense<0.000000e+00> : vector<8xf32>
    %96 = vector.multi_reduction <add>, %95, %cst_44 [1] : vector<8x8xf32> to vector<8xf32>
    %97 = vector.shape_cast %96 : vector<8xf32> to vector<8x1xf32>
    %cst_45 = arith.constant dense<0.000000e+00> : vector<8x8xf32>
    %98 = tpu.matmul %95, %86, %cst_45 {dimension_numbers = #tpu.dot_dimension_numbers<[1], [0], [0], [1], [0, 0, 1, 1], [], []>} : vector<8x8xf32>, vector<8x8xf32>, vector<8x8xf32> -> vector<8x8xf32>
    %99 = tpu.reciprocal %97 {approx = true} : vector<8x1xf32> -> vector<8x1xf32>
    %100 = vector.broadcast %99 : vector<8x1xf32> to vector<8x8xf32>
    %101 = arith.mulf %98, %100 : vector<8x8xf32>
    %102 = vector.extract_strided_slice %31 {offsets = [0, 12], sizes = [8, 4], strides = [1, 1]} : vector<8x16xf32> to vector<8x4xf32>
    %103 = vector.extract_strided_slice %34 {offsets = [0, 12], sizes = [8, 4], strides = [1, 1]} : vector<8x16xf32> to vector<8x4xf32>
    %104 = vector.extract_strided_slice %37 {offsets = [0, 4], sizes = [8, 4], strides = [1, 1]} : vector<8x8xf32> to vector<8x4xf32>
    %105 = vector.extract_strided_slice %40 {offsets = [0, 4], sizes = [8, 4], strides = [1, 1]} : vector<8x8xf32> to vector<8x4xf32>
    %106 = vector.extract_strided_slice %24 {offsets = [0, 8], sizes = [8, 8], strides = [1, 1]} : vector<8x16xf32> to vector<8x8xf32>
    "tpu.trace_start"() <{level = 10 : i32, message = "tp,sp->ts"}> : () -> ()
    %cst_46 = arith.constant dense<0.000000e+00> : vector<8x8xf32>
    %107 = tpu.matmul %102, %104, %cst_46 {dimension_numbers = #tpu.dot_dimension_numbers<[1], [1], [0], [0], [0, 0, 1, 0], [], []>} : vector<8x4xf32>, vector<8x4xf32>, vector<8x8xf32> -> vector<8x8xf32>
    %cst_47 = arith.constant dense<0.000000e+00> : vector<8x8xf32>
    %108 = tpu.matmul %103, %105, %cst_47 {dimension_numbers = #tpu.dot_dimension_numbers<[1], [1], [0], [0], [0, 0, 1, 0], [], []>} : vector<8x4xf32>, vector<8x4xf32>, vector<8x8xf32> -> vector<8x8xf32>
    "tpu.trace_stop"() : () -> ()
    %109 = arith.addf %107, %108 : vector<8x8xf32>
    %110 = arith.addf %109, %41 : vector<8x8xf32>
    %cst_48 = arith.constant dense<0xFF800000> : vector<8xf32>
    %111 = vector.multi_reduction <maximumf>, %110, %cst_48 [1] : vector<8x8xf32> to vector<8xf32>
    %112 = vector.shape_cast %111 : vector<8xf32> to vector<8x1xf32>
    %113 = vector.broadcast %112 : vector<8x1xf32> to vector<8x8xf32>
    %114 = arith.subf %110, %113 : vector<8x8xf32>
    %115 = math.exp %114 : vector<8x8xf32>
    %cst_49 = arith.constant dense<0.000000e+00> : vector<8xf32>
    %116 = vector.multi_reduction <add>, %115, %cst_49 [1] : vector<8x8xf32> to vector<8xf32>
    %117 = vector.shape_cast %116 : vector<8xf32> to vector<8x1xf32>
    %cst_50 = arith.constant dense<0.000000e+00> : vector<8x8xf32>
    %118 = tpu.matmul %115, %106, %cst_50 {dimension_numbers = #tpu.dot_dimension_numbers<[1], [0], [0], [1], [0, 0, 1, 1], [], []>} : vector<8x8xf32>, vector<8x8xf32>, vector<8x8xf32> -> vector<8x8xf32>
    %119 = tpu.reciprocal %117 {approx = true} : vector<8x1xf32> -> vector<8x1xf32>
    %120 = vector.broadcast %119 : vector<8x1xf32> to vector<8x8xf32>
    %121 = arith.mulf %118, %120 : vector<8x8xf32>
    %122 = tpu.concatenate %61, %81, %101, %121 in 1 : vector<8x8xf32>, vector<8x8xf32>, vector<8x8xf32>, vector<8x8xf32> -> vector<8x32xf32>
    %c0_51 = arith.constant 0 : index
    %c0_52 = arith.constant 0 : index
    %123 = vector.load %arg9[%c0_51, %c0_52] : memref<32x32xf32, #tpu.memory_space<vmem>>, vector<32x32xf32>
    %cst_53 = arith.constant dense<0.000000e+00> : vector<8x32xf32>
    %124 = tpu.matmul %122, %123, %cst_53 {dimension_numbers = #tpu.dot_dimension_numbers<[1], [0], [0], [1], [0, 0, 1, 1], [], []>} : vector<8x32xf32>, vector<32x32xf32>, vector<8x32xf32> -> vector<8x32xf32>
    %125 = arith.addf %1, %124 : vector<8x32xf32>
    %c0_54 = arith.constant 0 : index
    %c0_55 = arith.constant 0 : index
    %126 = vector.load %arg3[%c0_54, %c0_55] : memref<1x32xf32, #tpu.memory_space<vmem>>, vector<1x32xf32>
    %127 = arith.mulf %125, %125 : vector<8x32xf32>
    %cst_56 = arith.constant dense<0.000000e+00> : vector<8xf32>
    %128 = vector.multi_reduction <add>, %127, %cst_56 [1] : vector<8x32xf32> to vector<8xf32>
    %129 = vector.shape_cast %128 : vector<8xf32> to vector<8x1xf32>
    %cst_57 = arith.constant 3.200000e+01 : f32
    %130 = vector.broadcast %cst_57 : f32 to vector<8x1xf32>
    %131 = arith.divf %129, %130 : vector<8x1xf32>
    %cst_58 = arith.constant 9.99999974E-6 : f32
    %132 = vector.broadcast %cst_58 : f32 to vector<8x1xf32>
    %133 = arith.addf %131, %132 : vector<8x1xf32>
    %134 = math.rsqrt %133 : vector<8x1xf32>
    %135 = vector.broadcast %134 : vector<8x1xf32> to vector<8x32xf32>
    %136 = arith.mulf %125, %135 : vector<8x32xf32>
    %137 = vector.broadcast %126 : vector<1x32xf32> to vector<8x32xf32>
    %138 = arith.mulf %136, %137 : vector<8x32xf32>
    %c0_59 = arith.constant 0 : index
    %c0_60 = arith.constant 0 : index
    %139 = vector.load %arg10[%c0_59, %c0_60] : memref<32x64xf32, #tpu.memory_space<vmem>>, vector<32x64xf32>
    %cst_61 = arith.constant dense<0.000000e+00> : vector<8x64xf32>
    %140 = tpu.matmul %138, %139, %cst_61 {dimension_numbers = #tpu.dot_dimension_numbers<[1], [0], [0], [1], [0, 0, 1, 1], [], []>} : vector<8x32xf32>, vector<32x64xf32>, vector<8x64xf32> -> vector<8x64xf32>
    %c0_62 = arith.constant 0 : index
    %c0_63 = arith.constant 0 : index
    %141 = vector.load %arg11[%c0_62, %c0_63] : memref<32x64xf32, #tpu.memory_space<vmem>>, vector<32x64xf32>
    %cst_64 = arith.constant dense<0.000000e+00> : vector<8x64xf32>
    %142 = tpu.matmul %138, %141, %cst_64 {dimension_numbers = #tpu.dot_dimension_numbers<[1], [0], [0], [1], [0, 0, 1, 1], [], []>} : vector<8x32xf32>, vector<32x64xf32>, vector<8x64xf32> -> vector<8x64xf32>
    %143 = arith.negf %140 : vector<8x64xf32>
    %144 = math.exp %143 : vector<8x64xf32>
    %cst_65 = arith.constant 1.000000e+00 : f32
    %145 = vector.broadcast %cst_65 : f32 to vector<8x64xf32>
    %146 = arith.addf %145, %144 : vector<8x64xf32>
    %147 = arith.divf %145, %146 : vector<8x64xf32>
    %148 = arith.mulf %140, %147 : vector<8x64xf32>
    %149 = arith.mulf %148, %142 : vector<8x64xf32>
    %c0_66 = arith.constant 0 : index
    %c0_67 = arith.constant 0 : index
    %150 = vector.load %arg12[%c0_66, %c0_67] : memref<64x32xf32, #tpu.memory_space<vmem>>, vector<64x32xf32>
    %cst_68 = arith.constant dense<0.000000e+00> : vector<8x32xf32>
    %151 = tpu.matmul %149, %150, %cst_68 {dimension_numbers = #tpu.dot_dimension_numbers<[1], [0], [0], [1], [0, 0, 1, 1], [], []>} : vector<8x64xf32>, vector<64x32xf32>, vector<8x32xf32> -> vector<8x32xf32>
    %152 = arith.addf %125, %151 : vector<8x32xf32>
    %c0_69 = arith.constant 0 : index
    %c0_70 = arith.constant 0 : index
    %c0_71 = arith.constant 0 : index
    %153 = vector.load %arg18[%c0_69, %c0_70, %c0_71] : memref<1x8x32xf32, #tpu.memory_space<vmem>>, vector<1x8x32xf32>
    %154 = vector.shape_cast %153 : vector<1x8x32xf32> to vector<8x32xf32>
    %155 = vector.shape_cast %152 : vector<8x32xf32> to vector<1x8x32xf32>
    tpu.vector_store %arg18[%c0_69, %c0_70, %c0_71], %155 {strides = array<i32>} : memref<1x8x32xf32, #tpu.memory_space<vmem>>, vector<1x8x32xf32>,
    return
  }
  func.func @transform_0(%arg0: i32) -> (i32, i32, i32) {
    %c0_i32 = arith.constant 0 : i32
    %c0_i32_0 = arith.constant 0 : i32
    %c0_i32_1 = arith.constant 0 : i32
    return %arg0, %c0_i32, %c0_i32_0 : i32, i32, i32
  }
  func.func @transform_1(%arg0: i32) -> (i32, i32) {
    %c0_i32 = arith.constant 0 : i32
    %c0_i32_0 = arith.constant 0 : i32
    %c0_i32_1 = arith.constant 0 : i32
    return %c0_i32, %c0_i32_0 : i32, i32
  }
  func.func @transform_2(%arg0: i32) -> (i32, i32) {
    %c0_i32 = arith.constant 0 : i32
    %c0_i32_0 = arith.constant 0 : i32
    %c0_i32_1 = arith.constant 0 : i32
    return %c0_i32, %c0_i32_0 : i32, i32
  }
  func.func @transform_3(%arg0: i32) -> (i32, i32) {
    %c0_i32 = arith.constant 0 : i32
    %c0_i32_0 = arith.constant 0 : i32
    %c0_i32_1 = arith.constant 0 : i32
    return %c0_i32, %c0_i32_0 : i32, i32
  }
  func.func @transform_4(%arg0: i32) -> (i32, i32) {
    %c0_i32 = arith.constant 0 : i32
    %c0_i32_0 = arith.constant 0 : i32
    %c0_i32_1 = arith.constant 0 : i32
    return %c0_i32, %c0_i32_0 : i32, i32
  }
  func.func @transform_5(%arg0: i32) -> (i32, i32) {
    %c0_i32 = arith.constant 0 : i32
    %c0_i32_0 = arith.constant 0 : i32
    %c0_i32_1 = arith.constant 0 : i32
    return %c0_i32, %c0_i32_0 : i32, i32
  }
  func.func @transform_6(%arg0: i32) -> (i32, i32) {
    %c0_i32 = arith.constant 0 : i32
    %c0_i32_0 = arith.constant 0 : i32
    %c0_i32_1 = arith.constant 0 : i32
    return %c0_i32, %c0_i32_0 : i32, i32
  }
  func.func @transform_7(%arg0: i32) -> (i32, i32) {
    %c0_i32 = arith.constant 0 : i32
    %c0_i32_0 = arith.constant 0 : i32
    %c0_i32_1 = arith.constant 0 : i32
    return %c0_i32, %c0_i32_0 : i32, i32
  }
  func.func @transform_8(%arg0: i32) -> (i32, i32) {
    %c0_i32 = arith.constant 0 : i32
    %c0_i32_0 = arith.constant 0 : i32
    %c0_i32_1 = arith.constant 0 : i32
    return %c0_i32, %c0_i32_0 : i32, i32
  }
  func.func @transform_9(%arg0: i32) -> (i32, i32) {
    %c0_i32 = arith.constant 0 : i32
    %c0_i32_0 = arith.constant 0 : i32
    %c0_i32_1 = arith.constant 0 : i32
    return %c0_i32, %c0_i32_0 : i32, i32
  }
  func.func @transform_10(%arg0: i32) -> (i32, i32) {
    %c0_i32 = arith.constant 0 : i32
    %c0_i32_0 = arith.constant 0 : i32
    %c0_i32_1 = arith.constant 0 : i32
    return %c0_i32, %c0_i32_0 : i32, i32
  }
  func.func @transform_11(%arg0: i32) -> (i32, i32) {
    %c0_i32 = arith.constant 0 : i32
    %c0_i32_0 = arith.constant 0 : i32
    %c0_i32_1 = arith.constant 0 : i32
    return %c0_i32, %c0_i32_0 : i32, i32
  }
  func.func @transform_12(%arg0: i32) -> (i32, i32) {
    %c0_i32 = arith.constant 0 : i32
    %c0_i32_0 = arith.constant 0 : i32
    %c0_i32_1 = arith.constant 0 : i32
    return %c0_i32, %c0_i32_0 : i32, i32
  }
  func.func @transform_13(%arg0: i32) -> (i32, i32) {
    %c0_i32 = arith.constant 0 : i32
    %c0_i32_0 = arith.constant 0 : i32
    %c0_i32_1 = arith.constant 0 : i32
    return %c0_i32, %c0_i32_0 : i32, i32
  }
  func.func @transform_14(%arg0: i32) -> (i32, i32) {
    %c0_i32 = arith.constant 0 : i32
    %c0_i32_0 = arith.constant 0 : i32
    %c0_i32_1 = arith.constant 0 : i32
    return %c0_i32, %c0_i32_0 : i32, i32
  }
  func.func @transform_15(%arg0: i32) -> (i32, i32) {
    %c0_i32 = arith.constant 0 : i32
    %c0_i32_0 = arith.constant 0 : i32
    %c0_i32_1 = arith.constant 0 : i32
    return %c0_i32, %c0_i32_0 : i32, i32
  }
  func.func @transform_16(%arg0: i32) -> (i32, i32) {
    %c0_i32 = arith.constant 0 : i32
    %c0_i32_0 = arith.constant 0 : i32
    %c0_i32_1 = arith.constant 0 : i32
    return %c0_i32, %c0_i32_0 : i32, i32
  }
  func.func @transform_17(%arg0: i32) -> (i32, i32, i32) {
    %c0_i32 = arith.constant 0 : i32
    %c0_i32_0 = arith.constant 0 : i32
    %c0_i32_1 = arith.constant 0 : i32
    return %arg0, %c0_i32, %c0_i32_0 : i32, i32, i32
  }
}

</mosaic_0001>

<llo_original>
// kernel: tpu_custom_call.1
$region0: #{tpu_custom_call.1}
  #allocation0 [shape = 'u32[]', space=smem, size = 0x4, offset = 0x4, fixed_abs, tag = 'smem constant byte address 0x4 - core index']
  #allocation1 [shape = 'u32[144,128]{1,0:T(1,128)}', space=vmem, size = 0x12000, scoped, tag = 'internal scratch']
  %s0 = inlined_call_operand.vmem [shape: f32[2,8,32], index: 0, kind: input, shape index: {}]
  %s1 = inlined_call_operand.vmem [shape: f32[1,32], index: 1, kind: input, shape index: {}]
  %s2 = inlined_call_operand.vmem [shape: f32[1,32], index: 2, kind: input, shape index: {}]
  %s3 = inlined_call_operand.vmem [shape: f32[32,16], index: 3, kind: input, shape index: {}]
  %s4 = inlined_call_operand.vmem [shape: f32[32,16], index: 4, kind: input, shape index: {}]
  %s5 = inlined_call_operand.vmem [shape: f32[32,8], index: 5, kind: input, shape index: {}]
  %s6 = inlined_call_operand.vmem [shape: f32[32,8], index: 6, kind: input, shape index: {}]
  %s7 = inlined_call_operand.vmem [shape: f32[32,16], index: 7, kind: input, shape index: {}]
  %s8 = inlined_call_operand.vmem [shape: f32[32,32], index: 8, kind: input, shape index: {}]
  %s9 = inlined_call_operand.vmem [shape: f32[32,64], index: 9, kind: input, shape index: {}]
  %s10 = inlined_call_operand.vmem [shape: f32[32,64], index: 10, kind: input, shape index: {}]
  %s11 = inlined_call_operand.vmem [shape: f32[64,32], index: 11, kind: input, shape index: {}]
  %s12 = inlined_call_operand.vmem [shape: f32[8,16], index: 12, kind: input, shape index: {}]
  %s13 = inlined_call_operand.vmem [shape: f32[8,16], index: 13, kind: input, shape index: {}]
  %s14 = inlined_call_operand.vmem [shape: f32[8,8], index: 14, kind: input, shape index: {}]
  %s15 = inlined_call_operand.vmem [shape: f32[8,8], index: 15, kind: input, shape index: {}]
  %s16 = inlined_call_operand.vmem [shape: f32[8,8], index: 16, kind: input, shape index: {}]
  %s17 = inlined_call_operand.hbm [shape: f32[2,8,32], index: 17, kind: output, shape index: {}]
  %s18 = sld [smem:[#allocation0]]
  $region101: #{tpu_custom_call.1} parent=0
    _
  %s20 = ssub.s32 1, %s18
  %s21 = scalar_select 0, %s20, %s18
  $region1: #{tpu_custom_call.1} parent=0
    #allocation2 [shape = 'u8[8192]{0}', space=vmem, size = 0x2000, scoped, tag = 'output window, operand 0']
    #allocation3 [shape = 's32[2]{0}', space=sflag, size = 0x8, scoped, tag = 'scoped memory for tpu_custom_call.1']
    %22 = vsyncpa [#allocation3], 0
    %s23 = scalar_lea.sflag [#allocation3], 1
    %24 = vsyncpa %s23, 0
    loop: start=0, step=1, limit=4
    $region2: #{tpu_custom_call.1} parent=1 // loop_pre_header
      _
    $region3: #{tpu_custom_call.1} parent=1 // loop_header
      %s26 = sphi 0, %s30
      %p27 = scmp.ge.s32.totalorder %s26, 4
      %s36 = sphi 0, %s38
      %s39 = sphi 0, %s36
      %s40 = sphi 0, %s39
      %s56 = sphi 0, %s40
      %s60 = sphi 0, %s60
      %s62 = sphi 0, %s60
      %s63 = sphi 0, %s62
      %s77 = sphi 0, %s63
      %s81 = sphi 0, %s81
      %s83 = sphi 0, %s81
      %s84 = sphi 0, %s83
      %s98 = sphi 0, %s84
      %s102 = sphi 0, %s102
      %s104 = sphi 0, %s102
      %s105 = sphi 0, %s104
      %s119 = sphi 0, %s105
      %s123 = sphi 0, %s123
      %s125 = sphi 0, %s123
      %s126 = sphi 0, %s125
      %s140 = sphi 0, %s126
      %s144 = sphi 0, %s144
      %s146 = sphi 0, %s144
      %s147 = sphi 0, %s146
      %s161 = sphi 0, %s147
      %s165 = sphi 0, %s165
      %s167 = sphi 0, %s165
      %s168 = sphi 0, %s167
      %s182 = sphi 0, %s168
      %s186 = sphi 0, %s186
      %s188 = sphi 0, %s186
      %s189 = sphi 0, %s188
      %s203 = sphi 0, %s189
      %s207 = sphi 0, %s207
      %s209 = sphi 0, %s207
      %s210 = sphi 0, %s209
      %s224 = sphi 0, %s210
      %s228 = sphi 0, %s228
      %s230 = sphi 0, %s228
      %s231 = sphi 0, %s230
      %s245 = sphi 0, %s231
      %s249 = sphi 0, %s249
      %s251 = sphi 0, %s249
      %s252 = sphi 0, %s251
      %s266 = sphi 0, %s252
      %s270 = sphi 0, %s270
      %s272 = sphi 0, %s270
      %s273 = sphi 0, %s272
      %s287 = sphi 0, %s273
      %s291 = sphi 0, %s291
      %s293 = sphi 0, %s291
      %s294 = sphi 0, %s293
      %s308 = sphi 0, %s294
      %s312 = sphi 0, %s312
      %s314 = sphi 0, %s312
      %s315 = sphi 0, %s314
      %s329 = sphi 0, %s315
      %s333 = sphi 0, %s333
      %s335 = sphi 0, %s333
      %s336 = sphi 0, %s335
      %s350 = sphi 0, %s336
      %s354 = sphi 0, %s354
      %s356 = sphi 0, %s354
      %s357 = sphi 0, %s356
      %s371 = sphi 0, %s357
      %s375 = sphi 0, %s375
      %s377 = sphi 0, %s375
      %s378 = sphi 0, %s377
      %s392 = sphi 0, %s378
      %s398 = sphi 0, %s400
      %s401 = sphi 0, %s398
      %s402 = sphi 0, %s401
      %s418 = sphi 0, %s402
    $region4: #{tpu_custom_call.1} parent=1 // loop_header_branch
      %29 = sbr.rel (%p27) target = $region8
    $region5: #{tpu_custom_call.1} parent=1 // loop_body
      %s31 = ssub.s32 %s26, 1
      %s32 = ssub.s32 %s26, 2
      %s33 = sadd.s32 %s26, 1
      %s34 = ssub.s32 %s26, %s33
      %p35 = scmp.eq.s32.totalorder %s34, 0
      %s37 = sadd.s32 %s36, 1
      %s38 = scalar_select %p35, %s36, %s37
      %p41 = pneg %p35
      %p42 = scmp.eq.s32.totalorder %s26, 1
      %p43 = por %p41, %p42
      %p44 = scmp.ne.s32.totalorder %s36, %s39
      %p45 = scmp.eq.s32.totalorder %s26, 0
      %p46 = por %p44, %p45
      %p47 = scmp.ne.s32.totalorder %s36, %s39
      %p48 = scmp.eq.s32.totalorder %s31, 1
      %p49 = por %p47, %p48
      %p50 = scmp.ne.s32.totalorder %s39, %s40
      %p51 = scmp.eq.s32.totalorder %s31, 0
      %p52 = por %p50, %p51
      %p53 = scmp.ne.s32.totalorder %s39, %s40
      %p54 = scmp.eq.s32.totalorder %s32, 1
      %p55 = por %p53, %p54
      %p57 = scmp.ne.s32.totalorder %s40, %s56
      %p58 = scmp.eq.s32.totalorder %s32, 0
      %p59 = por %p57, %p58
      %s61 = sadd.s32 %s60, 1
      %p64 = scmp.eq.s32.totalorder %s26, 1
      %p65 = scmp.ne.s32.totalorder %s60, %s62
      %p66 = scmp.eq.s32.totalorder %s26, 0
      %p67 = por %p65, %p66
      %p68 = scmp.ne.s32.totalorder %s60, %s62
      %p69 = scmp.eq.s32.totalorder %s31, 1
      %p70 = por %p68, %p69
      %p71 = scmp.ne.s32.totalorder %s62, %s63
      %p72 = scmp.eq.s32.totalorder %s31, 0
      %p73 = por %p71, %p72
      %p74 = scmp.ne.s32.totalorder %s62, %s63
      %p75 = scmp.eq.s32.totalorder %s32, 1
      %p76 = por %p74, %p75
      %p78 = scmp.ne.s32.totalorder %s63, %s77
      %p79 = scmp.eq.s32.totalorder %s32, 0
      %p80 = por %p78, %p79
      %s82 = sadd.s32 %s81, 1
      %p85 = scmp.eq.s32.totalorder %s26, 1
      %p86 = scmp.ne.s32.totalorder %s81, %s83
      %p87 = scmp.eq.s32.totalorder %s26, 0
      %p88 = por %p86, %p87
      %p89 = scmp.ne.s32.totalorder %s81, %s83
      %p90 = scmp.eq.s32.totalorder %s31, 1
      %p91 = por %p89, %p90
      %p92 = scmp.ne.s32.totalorder %s83, %s84
      %p93 = scmp.eq.s32.totalorder %s31, 0
      %p94 = por %p92, %p93
      %p95 = scmp.ne.s32.totalorder %s83, %s84
      %p96 = scmp.eq.s32.totalorder %s32, 1
      %p97 = por %p95, %p96
      %p99 = scmp.ne.s32.totalorder %s84, %s98
      %p100 = scmp.eq.s32.totalorder %s32, 0
      %p101 = por %p99, %p100
      %s103 = sadd.s32 %s102, 1
      %p106 = scmp.eq.s32.totalorder %s26, 1
      %p107 = scmp.ne.s32.totalorder %s102, %s104
      %p108 = scmp.eq.s32.totalorder %s26, 0
      %p109 = por %p107, %p108
      %p110 = scmp.ne.s32.totalorder %s102, %s104
      %p111 = scmp.eq.s32.totalorder %s31, 1
      %p112 = por %p110, %p111
      %p113 = scmp.ne.s32.totalorder %s104, %s105
      %p114 = scmp.eq.s32.totalorder %s31, 0
      %p115 = por %p113, %p114
      %p116 = scmp.ne.s32.totalorder %s104, %s105
      %p117 = scmp.eq.s32.totalorder %s32, 1
      %p118 = por %p116, %p117
      %p120 = scmp.ne.s32.totalorder %s105, %s119
      %p121 = scmp.eq.s32.totalorder %s32, 0
      %p122 = por %p120, %p121
      %s124 = sadd.s32 %s123, 1
      %p127 = scmp.eq.s32.totalorder %s26, 1
      %p128 = scmp.ne.s32.totalorder %s123, %s125
      %p129 = scmp.eq.s32.totalorder %s26, 0
      %p130 = por %p128, %p129
      %p131 = scmp.ne.s32.totalorder %s123, %s125
      %p132 = scmp.eq.s32.totalorder %s31, 1
      %p133 = por %p131, %p132
      %p134 = scmp.ne.s32.totalorder %s125, %s126
      %p135 = scmp.eq.s32.totalorder %s31, 0
      %p136 = por %p134, %p135
      %p137 = scmp.ne.s32.totalorder %s125, %s126
      %p138 = scmp.eq.s32.totalorder %s32, 1
      %p139 = por %p137, %p138
      %p141 = scmp.ne.s32.totalorder %s126, %s140
      %p142 = scmp.eq.s32.totalorder %s32, 0
      %p143 = por %p141, %p142
      %s145 = sadd.s32 %s144, 1
      %p148 = scmp.eq.s32.totalorder %s26, 1
      %p149 = scmp.ne.s32.totalorder %s144, %s146
      %p150 = scmp.eq.s32.totalorder %s26, 0
      %p151 = por %p149, %p150
      %p152 = scmp.ne.s32.totalorder %s144, %s146
      %p153 = scmp.eq.s32.totalorder %s31, 1
      %p154 = por %p152, %p153
      %p155 = scmp.ne.s32.totalorder %s146, %s147
      %p156 = scmp.eq.s32.totalorder %s31, 0
      %p157 = por %p155, %p156
      %p158 = scmp.ne.s32.totalorder %s146, %s147
      %p159 = scmp.eq.s32.totalorder %s32, 1
      %p160 = por %p158, %p159
      %p162 = scmp.ne.s32.totalorder %s147, %s161
      %p163 = scmp.eq.s32.totalorder %s32, 0
      %p164 = por %p162, %p163
      %s166 = sadd.s32 %s165, 1
      %p169 = scmp.eq.s32.totalorder %s26, 1
      %p170 = scmp.ne.s32.totalorder %s165, %s167
      %p171 = scmp.eq.s32.totalorder %s26, 0
      %p172 = por %p170, %p171
      %p173 = scmp.ne.s32.totalorder %s165, %s167
      %p174 = scmp.eq.s32.totalorder %s31, 1
      %p175 = por %p173, %p174
      %p176 = scmp.ne.s32.totalorder %s167, %s168
      %p177 = scmp.eq.s32.totalorder %s31, 0
      %p178 = por %p176, %p177
      %p179 = scmp.ne.s32.totalorder %s167, %s168
      %p180 = scmp.eq.s32.totalorder %s32, 1
      %p181 = por %p179, %p180
      %p183 = scmp.ne.s32.totalorder %s168, %s182
      %p184 = scmp.eq.s32.totalorder %s32, 0
      %p185 = por %p183, %p184
      %s187 = sadd.s32 %s186, 1
      %p190 = scmp.eq.s32.totalorder %s26, 1
      %p191 = scmp.ne.s32.totalorder %s186, %s188
      %p192 = scmp.eq.s32.totalorder %s26, 0
      %p193 = por %p191, %p192
      %p194 = scmp.ne.s32.totalorder %s186, %s188
      %p195 = scmp.eq.s32.totalorder %s31, 1
      %p196 = por %p194, %p195
      %p197 = scmp.ne.s32.totalorder %s188, %s189
      %p198 = scmp.eq.s32.totalorder %s31, 0
      %p199 = por %p197, %p198
      %p200 = scmp.ne.s32.totalorder %s188, %s189
      %p201 = scmp.eq.s32.totalorder %s32, 1
      %p202 = por %p200, %p201
      %p204 = scmp.ne.s32.totalorder %s189, %s203
      %p205 = scmp.eq.s32.totalorder %s32, 0
      %p206 = por %p204, %p205
      %s208 = sadd.s32 %s207, 1
      %p211 = scmp.eq.s32.totalorder %s26, 1
      %p212 = scmp.ne.s32.totalorder %s207, %s209
      %p213 = scmp.eq.s32.totalorder %s26, 0
      %p214 = por %p212, %p213
      %p215 = scmp.ne.s32.totalorder %s207, %s209
      %p216 = scmp.eq.s32.totalorder %s31, 1
      %p217 = por %p215, %p216
      %p218 = scmp.ne.s32.totalorder %s209, %s210
      %p219 = scmp.eq.s32.totalorder %s31, 0
      %p220 = por %p218, %p219
      %p221 = scmp.ne.s32.totalorder %s209, %s210
      %p222 = scmp.eq.s32.totalorder %s32, 1
      %p223 = por %p221, %p222
      %p225 = scmp.ne.s32.totalorder %s210, %s224
      %p226 = scmp.eq.s32.totalorder %s32, 0
      %p227 = por %p225, %p226
      %s229 = sadd.s32 %s228, 1
      %p232 = scmp.eq.s32.totalorder %s26, 1
      %p233 = scmp.ne.s32.totalorder %s228, %s230
      %p234 = scmp.eq.s32.totalorder %s26, 0
      %p235 = por %p233, %p234
      %p236 = scmp.ne.s32.totalorder %s228, %s230
      %p237 = scmp.eq.s32.totalorder %s31, 1
      %p238 = por %p236, %p237
      %p239 = scmp.ne.s32.totalorder %s230, %s231
      %p240 = scmp.eq.s32.totalorder %s31, 0
      %p241 = por %p239, %p240
      %p242 = scmp.ne.s32.totalorder %s230, %s231
      %p243 = scmp.eq.s32.totalorder %s32, 1
      %p244 = por %p242, %p243
      %p246 = scmp.ne.s32.totalorder %s231, %s245
      %p247 = scmp.eq.s32.totalorder %s32, 0
      %p248 = por %p246, %p247
      %s250 = sadd.s32 %s249, 1
      %p253 = scmp.eq.s32.totalorder %s26, 1
      %p254 = scmp.ne.s32.totalorder %s249, %s251
      %p255 = scmp.eq.s32.totalorder %s26, 0
      %p256 = por %p254, %p255
      %p257 = scmp.ne.s32.totalorder %s249, %s251
      %p258 = scmp.eq.s32.totalorder %s31, 1
      %p259 = por %p257, %p258
      %p260 = scmp.ne.s32.totalorder %s251, %s252
      %p261 = scmp.eq.s32.totalorder %s31, 0
      %p262 = por %p260, %p261
      %p263 = scmp.ne.s32.totalorder %s251, %s252
      %p264 = scmp.eq.s32.totalorder %s32, 1
      %p265 = por %p263, %p264
      %p267 = scmp.ne.s32.totalorder %s252, %s266
      %p268 = scmp.eq.s32.totalorder %s32, 0
      %p269 = por %p267, %p268
      %s271 = sadd.s32 %s270, 1
      %p274 = scmp.eq.s32.totalorder %s26, 1
      %p275 = scmp.ne.s32.totalorder %s270, %s272
      %p276 = scmp.eq.s32.totalorder %s26, 0
      %p277 = por %p275, %p276
      %p278 = scmp.ne.s32.totalorder %s270, %s272
      %p279 = scmp.eq.s32.totalorder %s31, 1
      %p280 = por %p278, %p279
      %p281 = scmp.ne.s32.totalorder %s272, %s273
      %p282 = scmp.eq.s32.totalorder %s31, 0
      %p283 = por %p281, %p282
      %p284 = scmp.ne.s32.totalorder %s272, %s273
      %p285 = scmp.eq.s32.totalorder %s32, 1
      %p286 = por %p284, %p285
      %p288 = scmp.ne.s32.totalorder %s273, %s287
      %p289 = scmp.eq.s32.totalorder %s32, 0
      %p290 = por %p288, %p289
      %s292 = sadd.s32 %s291, 1
      %p295 = scmp.eq.s32.totalorder %s26, 1
      %p296 = scmp.ne.s32.totalorder %s291, %s293
      %p297 = scmp.eq.s32.totalorder %s26, 0
      %p298 = por %p296, %p297
      %p299 = scmp.ne.s32.totalorder %s291, %s293
      %p300 = scmp.eq.s32.totalorder %s31, 1
      %p301 = por %p299, %p300
      %p302 = scmp.ne.s32.totalorder %s293, %s294
      %p303 = scmp.eq.s32.totalorder %s31, 0
      %p304 = por %p302, %p303
      %p305 = scmp.ne.s32.totalorder %s293, %s294
      %p306 = scmp.eq.s32.totalorder %s32, 1
      %p307 = por %p305, %p306
      %p309 = scmp.ne.s32.totalorder %s294, %s308
      %p310 = scmp.eq.s32.totalorder %s32, 0
      %p311 = por %p309, %p310
      %s313 = sadd.s32 %s312, 1
      %p316 = scmp.eq.s32.totalorder %s26, 1
      %p317 = scmp.ne.s32.totalorder %s312, %s314
      %p318 = scmp.eq.s32.totalorder %s26, 0
      %p319 = por %p317, %p318
      %p320 = scmp.ne.s32.totalorder %s312, %s314
      %p321 = scmp.eq.s32.totalorder %s31, 1
      %p322 = por %p320, %p321
      %p323 = scmp.ne.s32.totalorder %s314, %s315
      %p324 = scmp.eq.s32.totalorder %s31, 0
      %p325 = por %p323, %p324
      %p326 = scmp.ne.s32.totalorder %s314, %s315
      %p327 = scmp.eq.s32.totalorder %s32, 1
      %p328 = por %p326, %p327
      %p330 = scmp.ne.s32.totalorder %s315, %s329
      %p331 = scmp.eq.s32.totalorder %s32, 0
      %p332 = por %p330, %p331
      %s334 = sadd.s32 %s333, 1
      %p337 = scmp.eq.s32.totalorder %s26, 1
      %p338 = scmp.ne.s32.totalorder %s333, %s335
      %p339 = scmp.eq.s32.totalorder %s26, 0
      %p340 = por %p338, %p339
      %p341 = scmp.ne.s32.totalorder %s333, %s335
      %p342 = scmp.eq.s32.totalorder %s31, 1
      %p343 = por %p341, %p342
      %p344 = scmp.ne.s32.totalorder %s335, %s336
      %p345 = scmp.eq.s32.totalorder %s31, 0
      %p346 = por %p344, %p345
      %p347 = scmp.ne.s32.totalorder %s335, %s336
      %p348 = scmp.eq.s32.totalorder %s32, 1
      %p349 = por %p347, %p348
      %p351 = scmp.ne.s32.totalorder %s336, %s350
      %p352 = scmp.eq.s32.totalorder %s32, 0
      %p353 = por %p351, %p352
      %s355 = sadd.s32 %s354, 1
      %p358 = scmp.eq.s32.totalorder %s26, 1
      %p359 = scmp.ne.s32.totalorder %s354, %s356
      %p360 = scmp.eq.s32.totalorder %s26, 0
      %p361 = por %p359, %p360
      %p362 = scmp.ne.s32.totalorder %s354, %s356
      %p363 = scmp.eq.s32.totalorder %s31, 1
      %p364 = por %p362, %p363
      %p365 = scmp.ne.s32.totalorder %s356, %s357
      %p366 = scmp.eq.s32.totalorder %s31, 0
      %p367 = por %p365, %p366
      %p368 = scmp.ne.s32.totalorder %s356, %s357
      %p369 = scmp.eq.s32.totalorder %s32, 1
      %p370 = por %p368, %p369
      %p372 = scmp.ne.s32.totalorder %s357, %s371
      %p373 = scmp.eq.s32.totalorder %s32, 0
      %p374 = por %p372, %p373
      %s376 = sadd.s32 %s375, 1
      %p379 = scmp.eq.s32.totalorder %s26, 1
      %p380 = scmp.ne.s32.totalorder %s375, %s377
      %p381 = scmp.eq.s32.totalorder %s26, 0
      %p382 = por %p380, %p381
      %p383 = scmp.ne.s32.totalorder %s375, %s377
      %p384 = scmp.eq.s32.totalorder %s31, 1
      %p385 = por %p383, %p384
      %p386 = scmp.ne.s32.totalorder %s377, %s378
      %p387 = scmp.eq.s32.totalorder %s31, 0
      %p388 = por %p386, %p387
      %p389 = scmp.ne.s32.totalorder %s377, %s378
      %p390 = scmp.eq.s32.totalorder %s32, 1
      %p391 = por %p389, %p390
      %p393 = scmp.ne.s32.totalorder %s378, %s392
      %p394 = scmp.eq.s32.totalorder %s32, 0
      %p395 = por %p393, %p394
      %s396 = ssub.s32 %s26, %s33
      %p397 = scmp.eq.s32.totalorder %s396, 0
      %s399 = sadd.s32 %s398, 1
      %s400 = scalar_select %p397, %s398, %s399
      %p403 = pneg %p397
      %p404 = scmp.eq.s32.totalorder %s26, 1
      %p405 = por %p403, %p404
      %p406 = scmp.ne.s32.totalorder %s398, %s401
      %p407 = scmp.eq.s32.totalorder %s26, 0
      %p408 = por %p406, %p407
      %p409 = scmp.ne.s32.totalorder %s398, %s401
      %p410 = scmp.eq.s32.totalorder %s31, 1
      %p411 = por %p409, %p410
      %p412 = scmp.ne.s32.totalorder %s401, %s402
      %p413 = scmp.eq.s32.totalorder %s31, 0
      %p414 = por %p412, %p413
      %p415 = scmp.ne.s32.totalorder %s401, %s402
      %p416 = scmp.eq.s32.totalorder %s32, 1
      %p417 = por %p415, %p416
      %p419 = scmp.ne.s32.totalorder %s402, %s418
      %p420 = scmp.eq.s32.totalorder %s32, 0
      %p421 = por %p419, %p420
      %p422 = scmp.le.s32.totalorder 1, %s26
      %p423 = scmp.lt.s32.totalorder %s26, 3
      %p424 = pnand %p422, %p423
      %p425 = pneg %p424
      // Predicated region
      $region9: #{tpu_custom_call.1} parent=5 // pred_check
        _
      $region10: #{tpu_custom_call.1} parent=5 // pred_check_branch
        %427 = sbr.rel (%p424) target = $region12
      $region11: #{tpu_custom_call.1} parent=5 // pred_region
        %s428 = ssub.s32 %s26, 1
        // Predicated region
        $region13: #{tpu_custom_call.1} parent=11 // pred_check
          %p429 = pneg %p73
        $region14: #{tpu_custom_call.1} parent=11 // pred_check_branch
          %431 = sbr.rel (%p429) target = $region16
        $region15: #{tpu_custom_call.1} parent=11 // pred_region
          _
        $region16: #{tpu_custom_call.1} parent=11 // pred_fallthru
          _
        // Predicated region
        $region17: #{tpu_custom_call.1} parent=11 // pred_check
          %p432 = pneg %p94
        $region18: #{tpu_custom_call.1} parent=11 // pred_check_branch
          %434 = sbr.rel (%p432) target = $region20
        $region19: #{tpu_custom_call.1} parent=11 // pred_region
          _
        $region20: #{tpu_custom_call.1} parent=11 // pred_fallthru
          _
        // Predicated region
        $region21: #{tpu_custom_call.1} parent=11 // pred_check
          %p435 = pneg %p115
        $region22: #{tpu_custom_call.1} parent=11 // pred_check_branch
          %437 = sbr.rel (%p435) target = $region24
        $region23: #{tpu_custom_call.1} parent=11 // pred_region
          _
        $region24: #{tpu_custom_call.1} parent=11 // pred_fallthru
          _
        // Predicated region
        $region25: #{tpu_custom_call.1} parent=11 // pred_check
          %p438 = pneg %p136
        $region26: #{tpu_custom_call.1} parent=11 // pred_check_branch
          %440 = sbr.rel (%p438) target = $region28
        $region27: #{tpu_custom_call.1} parent=11 // pred_region
          _
        $region28: #{tpu_custom_call.1} parent=11 // pred_fallthru
          _
        // Predicated region
        $region29: #{tpu_custom_call.1} parent=11 // pred_check
          %p441 = pneg %p157
        $region30: #{tpu_custom_call.1} parent=11 // pred_check_branch
          %443 = sbr.rel (%p441) target = $region32
        $region31: #{tpu_custom_call.1} parent=11 // pred_region
          _
        $region32: #{tpu_custom_call.1} parent=11 // pred_fallthru
          _
        // Predicated region
        $region33: #{tpu_custom_call.1} parent=11 // pred_check
          %p444 = pneg %p178
        $region34: #{tpu_custom_call.1} parent=11 // pred_check_branch
          %446 = sbr.rel (%p444) target = $region36
        $region35: #{tpu_custom_call.1} parent=11 // pred_region
          _
        $region36: #{tpu_custom_call.1} parent=11 // pred_fallthru
          _
        // Predicated region
        $region37: #{tpu_custom_call.1} parent=11 // pred_check
          %p447 = pneg %p199
        $region38: #{tpu_custom_call.1} parent=11 // pred_check_branch
          %449 = sbr.rel (%p447) target = $region40
        $region39: #{tpu_custom_call.1} parent=11 // pred_region
          _
        $region40: #{tpu_custom_call.1} parent=11 // pred_fallthru
          _
        // Predicated region
        $region41: #{tpu_custom_call.1} parent=11 // pred_check
          %p450 = pneg %p220
        $region42: #{tpu_custom_call.1} parent=11 // pred_check_branch
          %452 = sbr.rel (%p450) target = $region44
        $region43: #{tpu_custom_call.1} parent=11 // pred_region
          _
        $region44: #{tpu_custom_call.1} parent=11 // pred_fallthru
          _
        // Predicated region
        $region45: #{tpu_custom_call.1} parent=11 // pred_check
          %p453 = pneg %p241
        $region46: #{tpu_custom_call.1} parent=11 // pred_check_branch
          %455 = sbr.rel (%p453) target = $region48
        $region47: #{tpu_custom_call.1} parent=11 // pred_region
          _
        $region48: #{tpu_custom_call.1} parent=11 // pred_fallthru
          _
        // Predicated region
        $region49: #{tpu_custom_call.1} parent=11 // pred_check
          %p456 = pneg %p262
        $region50: #{tpu_custom_call.1} parent=11 // pred_check_branch
          %458 = sbr.rel (%p456) target = $region52
        $region51: #{tpu_custom_call.1} parent=11 // pred_region
          _
        $region52: #{tpu_custom_call.1} parent=11 // pred_fallthru
          _
        // Predicated region
        $region53: #{tpu_custom_call.1} parent=11 // pred_check
          %p459 = pneg %p283
        $region54: #{tpu_custom_call.1} parent=11 // pred_check_branch
          %461 = sbr.rel (%p459) target = $region56
        $region55: #{tpu_custom_call.1} parent=11 // pred_region
          _
        $region56: #{tpu_custom_call.1} parent=11 // pred_fallthru
          _
        // Predicated region
        $region57: #{tpu_custom_call.1} parent=11 // pred_check
          %p462 = pneg %p304
        $region58: #{tpu_custom_call.1} parent=11 // pred_check_branch
          %464 = sbr.rel (%p462) target = $region60
        $region59: #{tpu_custom_call.1} parent=11 // pred_region
          _
        $region60: #{tpu_custom_call.1} parent=11 // pred_fallthru
          _
        // Predicated region
        $region61: #{tpu_custom_call.1} parent=11 // pred_check
          %p465 = pneg %p325
        $region62: #{tpu_custom_call.1} parent=11 // pred_check_branch
          %467 = sbr.rel (%p465) target = $region64
        $region63: #{tpu_custom_call.1} parent=11 // pred_region
          _
        $region64: #{tpu_custom_call.1} parent=11 // pred_fallthru
          _
        // Predicated region
        $region65: #{tpu_custom_call.1} parent=11 // pred_check
          %p468 = pneg %p346
        $region66: #{tpu_custom_call.1} parent=11 // pred_check_branch
          %470 = sbr.rel (%p468) target = $region68
        $region67: #{tpu_custom_call.1} parent=11 // pred_region
          _
        $region68: #{tpu_custom_call.1} parent=11 // pred_fallthru
          _
        // Predicated region
        $region69: #{tpu_custom_call.1} parent=11 // pred_check
          %p471 = pneg %p367
        $region70: #{tpu_custom_call.1} parent=11 // pred_check_branch
          %473 = sbr.rel (%p471) target = $region72
        $region71: #{tpu_custom_call.1} parent=11 // pred_region
          _
        $region72: #{tpu_custom_call.1} parent=11 // pred_fallthru
          _
        // Predicated region
        $region73: #{tpu_custom_call.1} parent=11 // pred_check
          %p474 = pneg %p388
        $region74: #{tpu_custom_call.1} parent=11 // pred_check_branch
          %476 = sbr.rel (%p474) target = $region76
        $region75: #{tpu_custom_call.1} parent=11 // pred_region
          _
        $region76: #{tpu_custom_call.1} parent=11 // pred_fallthru
          _
      $region12: #{tpu_custom_call.1} parent=5 // pred_fallthru
        _
      %p477 = scmp.lt.s32.totalorder %s26, 2
      // Predicated region
      $region77: #{tpu_custom_call.1} parent=5 // pred_check
        %p478 = pneg %p477
      $region78: #{tpu_custom_call.1} parent=5 // pred_check_branch
        %480 = sbr.rel (%p478) target = $region80
      $region79: #{tpu_custom_call.1} parent=5 // pred_region
        // Predicated region
        $region81: #{tpu_custom_call.1} parent=79 // pred_check
          %p481 = pneg %p46
        $region82: #{tpu_custom_call.1} parent=79 // pred_check_branch
          %483 = sbr.rel (%p481) target = $region84
        $region83: #{tpu_custom_call.1} parent=79 // pred_region
          %p484 = scmp.lt.s32.totalorder %s26, 1
          %s485 = scalar_select %p484, %s26, 1
          %s486 = smul.addr %s485, 8
          %s487 = scalar_lea.vmem %s0, %s486
        $region84: #{tpu_custom_call.1} parent=79 // pred_fallthru
          _
      $region80: #{tpu_custom_call.1} parent=5 // pred_fallthru
        _
      %p488 = scmp.le.s32.totalorder 1, %s26
      %p489 = scmp.lt.s32.totalorder %s26, 3
      %p490 = pnand %p488, %p489
      %p491 = pneg %p490
      // Predicated region
      $region85: #{tpu_custom_call.1} parent=5 // pred_check
        _
      $region86: #{tpu_custom_call.1} parent=5 // pred_check_branch
        %493 = sbr.rel (%p490) target = $region88
      $region87: #{tpu_custom_call.1} parent=5 // pred_region
        %s494 = ssub.s32 %s26, 1
        %p495 = scmp.lt.s32.totalorder %s31, 1
        %s496 = scalar_select %p495, %s31, 1
        %s497 = smul.addr %s496, 8
        %s498 = scalar_lea.vmem %s0, %s497
        %p499 = pneg %p52
        %p500 = pneg %p49
        %p501 = pneg %p73
        %p502 = pneg %p70
        %p503 = pneg %p94
        %p504 = pneg %p91
        %p505 = pneg %p115
        %p506 = pneg %p112
        %p507 = pneg %p136
        %p508 = pneg %p133
        %p509 = pneg %p157
        %p510 = pneg %p154
        %p511 = pneg %p178
        %p512 = pneg %p175
        %p513 = pneg %p199
        %p514 = pneg %p196
        %p515 = pneg %p220
        %p516 = pneg %p217
        %p517 = pneg %p241
        %p518 = pneg %p238
        %p519 = pneg %p262
        %p520 = pneg %p259
        %p521 = pneg %p283
        %p522 = pneg %p280
        %p523 = pneg %p304
        %p524 = pneg %p301
        %p525 = pneg %p325
        %p526 = pneg %p322
        %p527 = pneg %p346
        %p528 = pneg %p343
        %p529 = pneg %p367
        %p530 = pneg %p364
        %p531 = pneg %p388
        %p532 = pneg %p385
        %p533 = pneg %p414
        %p534 = pneg %p411
        %s535 = sand.u32 %s401, 1
        %s536 = scalar_lea.sflag [#allocation3], %s535
        %s537 = sand.u32 %s401, 1
        %s538 = smul.addr %s537, 8
        %s539 = scalar_lea.vmem [#allocation2], %s538
        %p540 = scmp.lt.s32.totalorder %s31, 1
        %s541 = scalar_select %p540, %s31, 1
        %s542 = smul.addr %s541, 8
        %s543 = scalar_lea.vmem %s0, %s542
        %v544 = vld [vmem:[%s543] sm:$0xff]
        %v545 = vld [vmem:[%s1] sm:$0x1]
        %v546 = vmul.f32 %v544, %v544
        %vm547 = vcmask 261120
        %v548 = vsel %vm547, %v546, 0.0
        %549 = vadd.xlane.f32.xlu0 %v548
        %v550 = vpop.xlane.xlu0 %549
        %v551 = vrcp.pop 32.0
        %v552 = vmul.f32 %v550, %v551
        %v553 = vadd.f32 %v552, 1e-05
        %v554 = vrsqrt.pop %v553
        %v555 = vmul.f32 %v544, %v554
        %v557 = vlaneseq
        %v558 = vshrl.u32 %v557, 7
        %v559 = vsub.s32 0, %v558
        %v560 = vrot.slane %v545, %v559
        %v562 = vmul.f32 %v555, %v560
        %v563 = vld [vmem:[%s3] sm:$0xff]
        %v564 = vld [vmem:[%s3 + $0x8] sm:$0xff]
        %v565 = vld [vmem:[%s3 + $0x10] sm:$0xff]
        %v566 = vld [vmem:[%s3 + $0x18] sm:$0xff]
        %v568 = vsel %vm547, %v562, 0
        %570 = vmatprep.subr.mxu0 0.0
        %571 = vmatpush1.msra.mxu0 %v563
        %572 = vmatprep.subr.mxu0 0.0
        %573 = vmatpush1.msra.mxu0 %v564
        %574 = vmatprep.subr.mxu0 0.0
        %575 = vmatpush1.msra.mxu0 %v565
        %576 = vmatprep.subr.mxu0 0.0
        %577 = vmatpush1.msra.mxu0 %v566
        %578 = vmatprep.subr.mxu0 0.0
        %579 = vmatpush1.msra.mxu0 0.0
        %580 = vmatprep.subr.mxu0 0.0
        %581 = vmatpush1.msra.mxu0 0.0
        %582 = vmatprep.subr.mxu0 0.0
        %583 = vmatpush1.msra.mxu0 0.0
        %584 = vmatprep.subr.mxu0 0.0
        %585 = vmatpush1.msra.mxu0 0.0
        %586 = vmatprep.subr.mxu0 0.0
        %587 = vmatpush1.msra.mxu0 0.0
        %588 = vmatprep.subr.mxu0 0.0
        %589 = vmatpush1.msra.mxu0 0.0
        %590 = vmatprep.subr.mxu0 0.0
        %591 = vmatpush1.msra.mxu0 0.0
        %592 = vmatprep.subr.mxu0 0.0
        %593 = vmatpush1.msra.mxu0 0.0
        %594 = vmatprep.subr.mxu0 0.0
        %595 = vmatpush1.msra.mxu0 0.0
        %596 = vmatprep.subr.mxu0 0.0
        %597 = vmatpush1.msra.mxu0 0.0
        %598 = vmatprep.subr.mxu0 0.0
        %599 = vmatpush1.msra.mxu0 0.0
        %600 = vmatprep.subr.mxu0 0.0
        %601 = vmatpush1.msra.mxu0 0.0
        %602 = vmatprep.subr.mxu0 0.0
        %603 = vmatpush1.msra.mxu0 0.0
        %604 = vmatprep.subr.mxu0 0.0
        %605 = vmatpush1.msra.mxu0 0.0
        %606 = vmatprep.subr.mxu0 0.0
        %607 = vmatpush1.msra.mxu0 0.0
        %608 = vmatprep.subr.mxu0 0.0
        %609 = vmatpush1.msra.mxu0 0.0
        %610 = vmatprep.subr.mxu0 0.0
        %611 = vmatpush1.msra.mxu0 0.0
        %612 = vmatprep.subr.mxu0 0.0
        %613 = vmatpush1.msra.mxu0 0.0
        %614 = vmatprep.subr.mxu0 0.0
        %615 = vmatpush1.msra.mxu0 0.0
        %616 = vmatprep.subr.mxu0 0.0
        %617 = vmatpush1.msra.mxu0 0.0
        %618 = vmatprep.subr.mxu0 0.0
        %619 = vmatpush1.msra.mxu0 0.0
        %620 = vmatprep.subr.mxu0 0.0
        %621 = vmatpush1.msra.mxu0 0.0
        %622 = vmatprep.subr.mxu0 0.0
        %623 = vmatpush1.msra.mxu0 0.0
        %624 = vmatprep.subr.mxu0 0.0
        %625 = vmatpush1.msra.mxu0 0.0
        %626 = vmatprep.subr.mxu0 0.0
        %627 = vmatpush1.msra.mxu0 0.0
        %628 = vmatprep.subr.mxu0 0.0
        %629 = vmatpush1.msra.mxu0 0.0
        %630 = vmatprep.subr.mxu0 0.0
        %631 = vmatpush1.msra.mxu0 0.0
        %632 = vmatprep.subr.mxu0 0.0
        %633 = vmatpush1.msra.mxu0 0.0
        %634 = vmatprep.mubr.f32.mxu0 0.0
        %635 = vmatmul.mubr.f32.gmra.mrb[0].mxu0 %v568
        %v636 = vpop.f32.mrb[0].mxu0
        %v637 = vadd.f32 0.0, %v636
        %v638 = vpop.f32.mrb[0].mxu0
        %639 = vdwg.mxu0
        %v640 = vld [vmem:[%s4] sm:$0xff]
        %v641 = vld [vmem:[%s4 + $0x8] sm:$0xff]
        %v642 = vld [vmem:[%s4 + $0x10] sm:$0xff]
        %v643 = vld [vmem:[%s4 + $0x18] sm:$0xff]
        %644 = vmatprep.subr.mxu0 0.0
        %645 = vmatpush1.msra.mxu0 %v640
        %646 = vmatprep.subr.mxu0 0.0
        %647 = vmatpush1.msra.mxu0 %v641
        %648 = vmatprep.subr.mxu0 0.0
        %649 = vmatpush1.msra.mxu0 %v642
        %650 = vmatprep.subr.mxu0 0.0
        %651 = vmatpush1.msra.mxu0 %v643
        %652 = vmatprep.subr.mxu0 0.0
        %653 = vmatpush1.msra.mxu0 0.0
        %654 = vmatprep.subr.mxu0 0.0
        %655 = vmatpush1.msra.mxu0 0.0
        %656 = vmatprep.subr.mxu0 0.0
        %657 = vmatpush1.msra.mxu0 0.0
        %658 = vmatprep.subr.mxu0 0.0
        %659 = vmatpush1.msra.mxu0 0.0
        %660 = vmatprep.subr.mxu0 0.0
        %661 = vmatpush1.msra.mxu0 0.0
        %662 = vmatprep.subr.mxu0 0.0
        %663 = vmatpush1.msra.mxu0 0.0
        %664 = vmatprep.subr.mxu0 0.0
        %665 = vmatpush1.msra.mxu0 0.0
        %666 = vmatprep.subr.mxu0 0.0
        %667 = vmatpush1.msra.mxu0 0.0
        %668 = vmatprep.subr.mxu0 0.0
        %669 = vmatpush1.msra.mxu0 0.0
        %670 = vmatprep.subr.mxu0 0.0
        %671 = vmatpush1.msra.mxu0 0.0
        %672 = vmatprep.subr.mxu0 0.0
        %673 = vmatpush1.msra.mxu0 0.0
        %674 = vmatprep.subr.mxu0 0.0
        %675 = vmatpush1.msra.mxu0 0.0
        %676 = vmatprep.subr.mxu0 0.0
        %677 = vmatpush1.msra.mxu0 0.0
        %678 = vmatprep.subr.mxu0 0.0
        %679 = vmatpush1.msra.mxu0 0.0
        %680 = vmatprep.subr.mxu0 0.0
        %681 = vmatpush1.msra.mxu0 0.0
        %682 = vmatprep.subr.mxu0 0.0
        %683 = vmatpush1.msra.mxu0 0.0
        %684 = vmatprep.subr.mxu0 0.0
        %685 = vmatpush1.msra.mxu0 0.0
        %686 = vmatprep.subr.mxu0 0.0
        %687 = vmatpush1.msra.mxu0 0.0
        %688 = vmatprep.subr.mxu0 0.0
        %689 = vmatpush1.msra.mxu0 0.0
        %690 = vmatprep.subr.mxu0 0.0
        %691 = vmatpush1.msra.mxu0 0.0
        %692 = vmatprep.subr.mxu0 0.0
        %693 = vmatpush1.msra.mxu0 0.0
        %694 = vmatprep.subr.mxu0 0.0
        %695 = vmatpush1.msra.mxu0 0.0
        %696 = vmatprep.subr.mxu0 0.0
        %697 = vmatpush1.msra.mxu0 0.0
        %698 = vmatprep.subr.mxu0 0.0
        %699 = vmatpush1.msra.mxu0 0.0
        %700 = vmatprep.subr.mxu0 0.0
        %701 = vmatpush1.msra.mxu0 0.0
        %702 = vmatprep.subr.mxu0 0.0
        %703 = vmatpush1.msra.mxu0 0.0
        %704 = vmatprep.subr.mxu0 0.0
        %705 = vmatpush1.msra.mxu0 0.0
        %706 = vmatprep.subr.mxu0 0.0
        %707 = vmatpush1.msra.mxu0 0.0
        %708 = vmatprep.mubr.f32.mxu0 0.0
        %709 = vmatmul.mubr.f32.gmra.mrb[0].mxu0 %v568
        %v710 = vpop.f32.mrb[0].mxu0
        %v711 = vadd.f32 0.0, %v710
        %v712 = vpop.f32.mrb[0].mxu0
        %713 = vdwg.mxu0
        %v714 = vld [vmem:[%s5] sm:$0xff]
        %v715 = vld [vmem:[%s5 + $0x8] sm:$0xff]
        %v716 = vld [vmem:[%s5 + $0x10] sm:$0xff]
        %v717 = vld [vmem:[%s5 + $0x18] sm:$0xff]
        %718 = vmatprep.subr.mxu0 0.0
        %719 = vmatpush1.msra.mxu0 %v714
        %720 = vmatprep.subr.mxu0 0.0
        %721 = vmatpush1.msra.mxu0 %v715
        %722 = vmatprep.subr.mxu0 0.0
        %723 = vmatpush1.msra.mxu0 %v716
        %724 = vmatprep.subr.mxu0 0.0
        %725 = vmatpush1.msra.mxu0 %v717
        %726 = vmatprep.subr.mxu0 0.0
        %727 = vmatpush1.msra.mxu0 0.0
        %728 = vmatprep.subr.mxu0 0.0
        %729 = vmatpush1.msra.mxu0 0.0
        %730 = vmatprep.subr.mxu0 0.0
        %731 = vmatpush1.msra.mxu0 0.0
        %732 = vmatprep.subr.mxu0 0.0
        %733 = vmatpush1.msra.mxu0 0.0
        %734 = vmatprep.subr.mxu0 0.0
        %735 = vmatpush1.msra.mxu0 0.0
        %736 = vmatprep.subr.mxu0 0.0
        %737 = vmatpush1.msra.mxu0 0.0
        %738 = vmatprep.subr.mxu0 0.0
        %739 = vmatpush1.msra.mxu0 0.0
        %740 = vmatprep.subr.mxu0 0.0
        %741 = vmatpush1.msra.mxu0 0.0
        %742 = vmatprep.subr.mxu0 0.0
        %743 = vmatpush1.msra.mxu0 0.0
        %744 = vmatprep.subr.mxu0 0.0
        %745 = vmatpush1.msra.mxu0 0.0
        %746 = vmatprep.subr.mxu0 0.0
        %747 = vmatpush1.msra.mxu0 0.0
        %748 = vmatprep.subr.mxu0 0.0
        %749 = vmatpush1.msra.mxu0 0.0
        %750 = vmatprep.subr.mxu0 0.0
        %751 = vmatpush1.msra.mxu0 0.0
        %752 = vmatprep.subr.mxu0 0.0
        %753 = vmatpush1.msra.mxu0 0.0
        %754 = vmatprep.subr.mxu0 0.0
        %755 = vmatpush1.msra.mxu0 0.0
        %756 = vmatprep.subr.mxu0 0.0
        %757 = vmatpush1.msra.mxu0 0.0
        %758 = vmatprep.subr.mxu0 0.0
        %759 = vmatpush1.msra.mxu0 0.0
        %760 = vmatprep.subr.mxu0 0.0
        %761 = vmatpush1.msra.mxu0 0.0
        %762 = vmatprep.subr.mxu0 0.0
        %763 = vmatpush1.msra.mxu0 0.0
        %764 = vmatprep.subr.mxu0 0.0
        %765 = vmatpush1.msra.mxu0 0.0
        %766 = vmatprep.subr.mxu0 0.0
        %767 = vmatpush1.msra.mxu0 0.0
        %768 = vmatprep.subr.mxu0 0.0
        %769 = vmatpush1.msra.mxu0 0.0
        %770 = vmatprep.subr.mxu0 0.0
        %771 = vmatpush1.msra.mxu0 0.0
        %772 = vmatprep.subr.mxu0 0.0
        %773 = vmatpush1.msra.mxu0 0.0
        %774 = vmatprep.subr.mxu0 0.0
        %775 = vmatpush1.msra.mxu0 0.0
        %776 = vmatprep.subr.mxu0 0.0
        %777 = vmatpush1.msra.mxu0 0.0
        %778 = vmatprep.subr.mxu0 0.0
        %779 = vmatpush1.msra.mxu0 0.0
        %780 = vmatprep.subr.mxu0 0.0
        %781 = vmatpush1.msra.mxu0 0.0
        %782 = vmatprep.mubr.f32.mxu0 0.0
        %783 = vmatmul.mubr.f32.gmra.mrb[0].mxu0 %v568
        %v784 = vpop.f32.mrb[0].mxu0
        %v785 = vadd.f32 0.0, %v784
        %v786 = vpop.f32.mrb[0].mxu0
        %787 = vdwg.mxu0
        %v788 = vld [vmem:[%s6] sm:$0xff]
        %v789 = vld [vmem:[%s6 + $0x8] sm:$0xff]
        %v790 = vld [vmem:[%s6 + $0x10] sm:$0xff]
        %v791 = vld [vmem:[%s6 + $0x18] sm:$0xff]
        %792 = vmatprep.subr.mxu0 0.0
        %793 = vmatpush1.msra.mxu0 %v788
        %794 = vmatprep.subr.mxu0 0.0
        %795 = vmatpush1.msra.mxu0 %v789
        %796 = vmatprep.subr.mxu0 0.0
        %797 = vmatpush1.msra.mxu0 %v790
        %798 = vmatprep.subr.mxu0 0.0
        %799 = vmatpush1.msra.mxu0 %v791
        %800 = vmatprep.subr.mxu0 0.0
        %801 = vmatpush1.msra.mxu0 0.0
        %802 = vmatprep.subr.mxu0 0.0
        %803 = vmatpush1.msra.mxu0 0.0
        %804 = vmatprep.subr.mxu0 0.0
        %805 = vmatpush1.msra.mxu0 0.0
        %806 = vmatprep.subr.mxu0 0.0
        %807 = vmatpush1.msra.mxu0 0.0
        %808 = vmatprep.subr.mxu0 0.0
        %809 = vmatpush1.msra.mxu0 0.0
        %810 = vmatprep.subr.mxu0 0.0
        %811 = vmatpush1.msra.mxu0 0.0
        %812 = vmatprep.subr.mxu0 0.0
        %813 = vmatpush1.msra.mxu0 0.0
        %814 = vmatprep.subr.mxu0 0.0
        %815 = vmatpush1.msra.mxu0 0.0
        %816 = vmatprep.subr.mxu0 0.0
        %817 = vmatpush1.msra.mxu0 0.0
        %818 = vmatprep.subr.mxu0 0.0
        %819 = vmatpush1.msra.mxu0 0.0
        %820 = vmatprep.subr.mxu0 0.0
        %821 = vmatpush1.msra.mxu0 0.0
        %822 = vmatprep.subr.mxu0 0.0
        %823 = vmatpush1.msra.mxu0 0.0
        %824 = vmatprep.subr.mxu0 0.0
        %825 = vmatpush1.msra.mxu0 0.0
        %826 = vmatprep.subr.mxu0 0.0
        %827 = vmatpush1.msra.mxu0 0.0
        %828 = vmatprep.subr.mxu0 0.0
        %829 = vmatpush1.msra.mxu0 0.0
        %830 = vmatprep.subr.mxu0 0.0
        %831 = vmatpush1.msra.mxu0 0.0
        %832 = vmatprep.subr.mxu0 0.0
        %833 = vmatpush1.msra.mxu0 0.0
        %834 = vmatprep.subr.mxu0 0.0
        %835 = vmatpush1.msra.mxu0 0.0
        %836 = vmatprep.subr.mxu0 0.0
        %837 = vmatpush1.msra.mxu0 0.0
        %838 = vmatprep.subr.mxu0 0.0
        %839 = vmatpush1.msra.mxu0 0.0
        %840 = vmatprep.subr.mxu0 0.0
        %841 = vmatpush1.msra.mxu0 0.0
        %842 = vmatprep.subr.mxu0 0.0
        %843 = vmatpush1.msra.mxu0 0.0
        %844 = vmatprep.subr.mxu0 0.0
        %845 = vmatpush1.msra.mxu0 0.0
        %846 = vmatprep.subr.mxu0 0.0
        %847 = vmatpush1.msra.mxu0 0.0
        %848 = vmatprep.subr.mxu0 0.0
        %849 = vmatpush1.msra.mxu0 0.0
        %850 = vmatprep.subr.mxu0 0.0
        %851 = vmatpush1.msra.mxu0 0.0
        %852 = vmatprep.subr.mxu0 0.0
        %853 = vmatpush1.msra.mxu0 0.0
        %854 = vmatprep.subr.mxu0 0.0
        %855 = vmatpush1.msra.mxu0 0.0
        %856 = vmatprep.mubr.f32.mxu0 0.0
        %857 = vmatmul.mubr.f32.gmra.mrb[0].mxu0 %v568
        %v858 = vpop.f32.mrb[0].mxu0
        %v859 = vadd.f32 0.0, %v858
        %v860 = vpop.f32.mrb[0].mxu0
        %861 = vdwg.mxu0
        %v862 = vld [vmem:[%s7] sm:$0xff]
        %v863 = vld [vmem:[%s7 + $0x8] sm:$0xff]
        %v864 = vld [vmem:[%s7 + $0x10] sm:$0xff]
        %v865 = vld [vmem:[%s7 + $0x18] sm:$0xff]
        %866 = vmatprep.subr.mxu0 0.0
        %867 = vmatpush1.msra.mxu0 %v862
        %868 = vmatprep.subr.mxu0 0.0
        %869 = vmatpush1.msra.mxu0 %v863
        %870 = vmatprep.subr.mxu0 0.0
        %871 = vmatpush1.msra.mxu0 %v864
        %872 = vmatprep.subr.mxu0 0.0
        %873 = vmatpush1.msra.mxu0 %v865
        %874 = vmatprep.subr.mxu0 0.0
        %875 = vmatpush1.msra.mxu0 0.0
        %876 = vmatprep.subr.mxu0 0.0
        %877 = vmatpush1.msra.mxu0 0.0
        %878 = vmatprep.subr.mxu0 0.0
        %879 = vmatpush1.msra.mxu0 0.0
        %880 = vmatprep.subr.mxu0 0.0
        %881 = vmatpush1.msra.mxu0 0.0
        %882 = vmatprep.subr.mxu0 0.0
        %883 = vmatpush1.msra.mxu0 0.0
        %884 = vmatprep.subr.mxu0 0.0
        %885 = vmatpush1.msra.mxu0 0.0
        %886 = vmatprep.subr.mxu0 0.0
        %887 = vmatpush1.msra.mxu0 0.0
        %888 = vmatprep.subr.mxu0 0.0
        %889 = vmatpush1.msra.mxu0 0.0
        %890 = vmatprep.subr.mxu0 0.0
        %891 = vmatpush1.msra.mxu0 0.0
        %892 = vmatprep.subr.mxu0 0.0
        %893 = vmatpush1.msra.mxu0 0.0
        %894 = vmatprep.subr.mxu0 0.0
        %895 = vmatpush1.msra.mxu0 0.0
        %896 = vmatprep.subr.mxu0 0.0
        %897 = vmatpush1.msra.mxu0 0.0
        %898 = vmatprep.subr.mxu0 0.0
        %899 = vmatpush1.msra.mxu0 0.0
        %900 = vmatprep.subr.mxu0 0.0
        %901 = vmatpush1.msra.mxu0 0.0
        %902 = vmatprep.subr.mxu0 0.0
        %903 = vmatpush1.msra.mxu0 0.0
        %904 = vmatprep.subr.mxu0 0.0
        %905 = vmatpush1.msra.mxu0 0.0
        %906 = vmatprep.subr.mxu0 0.0
        %907 = vmatpush1.msra.mxu0 0.0
        %908 = vmatprep.subr.mxu0 0.0
        %909 = vmatpush1.msra.mxu0 0.0
        %910 = vmatprep.subr.mxu0 0.0
        %911 = vmatpush1.msra.mxu0 0.0
        %912 = vmatprep.subr.mxu0 0.0
        %913 = vmatpush1.msra.mxu0 0.0
        %914 = vmatprep.subr.mxu0 0.0
        %915 = vmatpush1.msra.mxu0 0.0
        %916 = vmatprep.subr.mxu0 0.0
        %917 = vmatpush1.msra.mxu0 0.0
        %918 = vmatprep.subr.mxu0 0.0
        %919 = vmatpush1.msra.mxu0 0.0
        %920 = vmatprep.subr.mxu0 0.0
        %921 = vmatpush1.msra.mxu0 0.0
        %922 = vmatprep.subr.mxu0 0.0
        %923 = vmatpush1.msra.mxu0 0.0
        %924 = vmatprep.subr.mxu0 0.0
        %925 = vmatpush1.msra.mxu0 0.0
        %926 = vmatprep.subr.mxu0 0.0
        %927 = vmatpush1.msra.mxu0 0.0
        %928 = vmatprep.subr.mxu0 0.0
        %929 = vmatpush1.msra.mxu0 0.0
        %930 = vmatprep.mubr.f32.mxu0 0.0
        %931 = vmatmul.mubr.f32.gmra.mrb[0].mxu0 %v568
        %v932 = vpop.f32.mrb[0].mxu0
        %v933 = vadd.f32 0.0, %v932
        %v934 = vpop.f32.mrb[0].mxu0
        %935 = vdwg.mxu0
        %v936 = vld [vmem:[%s12] sm:$0xff]
        %v937 = vld [vmem:[%s13] sm:$0xff]
        %v938 = vld [vmem:[%s14] sm:$0xff]
        %v939 = vld [vmem:[%s15] sm:$0xff]
        %v940 = vmul.f32 %v637, %v936
        %v941 = vmul.f32 %v711, %v937
        %v942 = vsub.f32 %v940, %v941
        %v943 = vmul.f32 %v711, %v936
        %v944 = vmul.f32 %v637, %v937
        %v945 = vadd.f32 %v943, %v944
        %v946 = vmul.f32 %v785, %v938
        %v947 = vmul.f32 %v859, %v939
        %v948 = vsub.f32 %v946, %v947
        %v949 = vmul.f32 %v859, %v938
        %v950 = vmul.f32 %v785, %v939
        %v951 = vadd.f32 %v949, %v950
        %v952 = vld [vmem:[%s16] sm:$0xff]
        %vm953 = vcmask 31744
        %v955 = vsel %vm953, %v945, 0
        %v958 = vsel %vm953, %v951, 0
        %960 = vmatprep.subr.mxu0 0.0
        %961 = vmatpush1.xpose.msra.mxu0 %v958
        %962 = vmatprep.subr.mxu0 0.0
        %963 = vmatpush1.xpose.msra.mxu0 0.0
        %964 = vmatprep.subr.mxu0 0.0
        %965 = vmatpush1.xpose.msra.mxu0 0.0
        %966 = vmatprep.subr.mxu0 0.0
        %967 = vmatpush1.xpose.msra.mxu0 0.0
        %968 = vmatprep.subr.mxu0 0.0
        %969 = vmatpush1.xpose.msra.mxu0 0.0
        %970 = vmatprep.subr.mxu0 0.0
        %971 = vmatpush1.xpose.msra.mxu0 0.0
        %972 = vmatprep.subr.mxu0 0.0
        %973 = vmatpush1.xpose.msra.mxu0 0.0
        %974 = vmatprep.subr.mxu0 0.0
        %975 = vmatpush1.xpose.msra.mxu0 0.0
        %976 = vmatprep.subr.mxu0 0.0
        %977 = vmatpush1.xpose.msra.mxu0 0.0
        %978 = vmatprep.subr.mxu0 0.0
        %979 = vmatpush1.xpose.msra.mxu0 0.0
        %980 = vmatprep.subr.mxu0 0.0
        %981 = vmatpush1.xpose.msra.mxu0 0.0
        %982 = vmatprep.subr.mxu0 0.0
        %983 = vmatpush1.xpose.msra.mxu0 0.0
        %984 = vmatprep.subr.mxu0 0.0
        %985 = vmatpush1.xpose.msra.mxu0 0.0
        %986 = vmatprep.subr.mxu0 0.0
        %987 = vmatpush1.xpose.msra.mxu0 0.0
        %988 = vmatprep.subr.mxu0 0.0
        %989 = vmatpush1.xpose.msra.mxu0 0.0
        %990 = vmatprep.subr.mxu0 0.0
        %991 = vmatpush1.xpose.msra.mxu0 0.0
        %992 = vmatprep.subr.mxu0 0.0
        %993 = vmatpush1.xpose.msra.mxu0 0.0
        %994 = vmatprep.subr.mxu0 0.0
        %995 = vmatpush1.xpose.msra.mxu0 0.0
        %996 = vmatprep.subr.mxu0 0.0
        %997 = vmatpush1.xpose.msra.mxu0 0.0
        %998 = vmatprep.subr.mxu0 0.0
        %999 = vmatpush1.xpose.msra.mxu0 0.0
        %1000 = vmatprep.subr.mxu0 0.0
        %1001 = vmatpush1.xpose.msra.mxu0 0.0
        %1002 = vmatprep.subr.mxu0 0.0
        %1003 = vmatpush1.xpose.msra.mxu0 0.0
        %1004 = vmatprep.subr.mxu0 0.0
        %1005 = vmatpush1.xpose.msra.mxu0 0.0
        %1006 = vmatprep.subr.mxu0 0.0
        %1007 = vmatpush1.xpose.msra.mxu0 0.0
        %1008 = vmatprep.subr.mxu0 0.0
        %1009 = vmatpush1.xpose.msra.mxu0 0.0
        %1010 = vmatprep.subr.mxu0 0.0
        %1011 = vmatpush1.xpose.msra.mxu0 0.0
        %1012 = vmatprep.subr.mxu0 0.0
        %1013 = vmatpush1.xpose.msra.mxu0 0.0
        %1014 = vmatprep.subr.mxu0 0.0
        %1015 = vmatpush1.xpose.msra.mxu0 0.0
        %1016 = vmatprep.subr.mxu0 0.0
        %1017 = vmatpush1.xpose.msra.mxu0 0.0
        %1018 = vmatprep.subr.mxu0 0.0
        %1019 = vmatpush1.xpose.msra.mxu0 0.0
        %1020 = vmatprep.subr.mxu0 0.0
        %1021 = vmatpush1.xpose.msra.mxu0 0.0
        %1022 = vmatprep.subr.mxu0 0.0
        %1023 = vmatpush1.xpose.msra.mxu0 0.0
        %1024 = vmatprep.mubr.f32.mxu0 0.0
        %1025 = vmatmul.mubr.f32.gmra.mrb[0].mxu0 %v955
        %v1026 = vpop.f32.mrb[0].mxu0
        %v1027 = vadd.f32 0.0, %v1026
        %v1028 = vpop.f32.mrb[0].mxu0
        %1029 = vdwg.mxu0
        %v1031 = vsel %vm953, %v942, 0
        %v1034 = vsel %vm953, %v948, 0
        %1036 = vmatprep.subr.mxu0 0.0
        %1037 = vmatpush1.xpose.msra.mxu0 %v1034
        %1038 = vmatprep.subr.mxu0 0.0
        %1039 = vmatpush1.xpose.msra.mxu0 0.0
        %1040 = vmatprep.subr.mxu0 0.0
        %1041 = vmatpush1.xpose.msra.mxu0 0.0
        %1042 = vmatprep.subr.mxu0 0.0
        %1043 = vmatpush1.xpose.msra.mxu0 0.0
        %1044 = vmatprep.subr.mxu0 0.0
        %1045 = vmatpush1.xpose.msra.mxu0 0.0
        %1046 = vmatprep.subr.mxu0 0.0
        %1047 = vmatpush1.xpose.msra.mxu0 0.0
        %1048 = vmatprep.subr.mxu0 0.0
        %1049 = vmatpush1.xpose.msra.mxu0 0.0
        %1050 = vmatprep.subr.mxu0 0.0
        %1051 = vmatpush1.xpose.msra.mxu0 0.0
        %1052 = vmatprep.subr.mxu0 0.0
        %1053 = vmatpush1.xpose.msra.mxu0 0.0
        %1054 = vmatprep.subr.mxu0 0.0
        %1055 = vmatpush1.xpose.msra.mxu0 0.0
        %1056 = vmatprep.subr.mxu0 0.0
        %1057 = vmatpush1.xpose.msra.mxu0 0.0
        %1058 = vmatprep.subr.mxu0 0.0
        %1059 = vmatpush1.xpose.msra.mxu0 0.0
        %1060 = vmatprep.subr.mxu0 0.0
        %1061 = vmatpush1.xpose.msra.mxu0 0.0
        %1062 = vmatprep.subr.mxu0 0.0
        %1063 = vmatpush1.xpose.msra.mxu0 0.0
        %1064 = vmatprep.subr.mxu0 0.0
        %1065 = vmatpush1.xpose.msra.mxu0 0.0
        %1066 = vmatprep.subr.mxu0 0.0
        %1067 = vmatpush1.xpose.msra.mxu0 0.0
        %1068 = vmatprep.subr.mxu0 0.0
        %1069 = vmatpush1.xpose.msra.mxu0 0.0
        %1070 = vmatprep.subr.mxu0 0.0
        %1071 = vmatpush1.xpose.msra.mxu0 0.0
        %1072 = vmatprep.subr.mxu0 0.0
        %1073 = vmatpush1.xpose.msra.mxu0 0.0
        %1074 = vmatprep.subr.mxu0 0.0
        %1075 = vmatpush1.xpose.msra.mxu0 0.0
        %1076 = vmatprep.subr.mxu0 0.0
        %1077 = vmatpush1.xpose.msra.mxu0 0.0
        %1078 = vmatprep.subr.mxu0 0.0
        %1079 = vmatpush1.xpose.msra.mxu0 0.0
        %1080 = vmatprep.subr.mxu0 0.0
        %1081 = vmatpush1.xpose.msra.mxu0 0.0
        %1082 = vmatprep.subr.mxu0 0.0
        %1083 = vmatpush1.xpose.msra.mxu0 0.0
        %1084 = vmatprep.subr.mxu0 0.0
        %1085 = vmatpush1.xpose.msra.mxu0 0.0
        %1086 = vmatprep.subr.mxu0 0.0
        %1087 = vmatpush1.xpose.msra.mxu0 0.0
        %1088 = vmatprep.subr.mxu0 0.0
        %1089 = vmatpush1.xpose.msra.mxu0 0.0
        %1090 = vmatprep.subr.mxu0 0.0
        %1091 = vmatpush1.xpose.msra.mxu0 0.0
        %1092 = vmatprep.subr.mxu0 0.0
        %1093 = vmatpush1.xpose.msra.mxu0 0.0
        %1094 = vmatprep.subr.mxu0 0.0
        %1095 = vmatpush1.xpose.msra.mxu0 0.0
        %1096 = vmatprep.subr.mxu0 0.0
        %1097 = vmatpush1.xpose.msra.mxu0 0.0
        %1098 = vmatprep.subr.mxu0 0.0
        %1099 = vmatpush1.xpose.msra.mxu0 0.0
        %1100 = vmatprep.mubr.f32.mxu0 0.0
        %1101 = vmatmul.mubr.f32.gmra.mrb[0].mxu0 %v1031
        %v1102 = vpop.f32.mrb[0].mxu0
        %v1103 = vadd.f32 %v1027, %v1102
        %v1104 = vpop.f32.mrb[0].mxu0
        %1105 = vdwg.mxu0
        %v1106 = vadd.f32 %v1103, %v952
        %vm1107 = vcmask 64512
        %v1108 = vsel %vm1107, %v1106, -inf
        %1109 = vmax.xlane.f32.xlu0 %v1108
        %v1110 = vpop.xlane.xlu0 %1109
        %v1111 = vsub.f32 %v1106, %v1110
        %v1112 = vmul.f32 %v1111, 1.442695
        %v1113 = vpow.pop %v1112
        %v1114 = vsel %vm1107, %v1113, 0.0
        %1115 = vadd.xlane.f32.xlu0 %v1114
        %v1116 = vpop.xlane.xlu0 %1115
        %v1118 = vsel %vm1107, %v1113, 0
        %1120 = vmatprep.subr.mxu0 0.0
        %1121 = vmatpush1.msra.mxu0 %v933
        %1122 = vmatprep.subr.mxu0 0.0
        %1123 = vmatpush1.msra.mxu0 0.0
        %1124 = vmatprep.subr.mxu0 0.0
        %1125 = vmatpush1.msra.mxu0 0.0
        %1126 = vmatprep.subr.mxu0 0.0
        %1127 = vmatpush1.msra.mxu0 0.0
        %1128 = vmatprep.subr.mxu0 0.0
        %1129 = vmatpush1.msra.mxu0 0.0
        %1130 = vmatprep.subr.mxu0 0.0
        %1131 = vmatpush1.msra.mxu0 0.0
        %1132 = vmatprep.subr.mxu0 0.0
        %1133 = vmatpush1.msra.mxu0 0.0
        %1134 = vmatprep.subr.mxu0 0.0
        %1135 = vmatpush1.msra.mxu0 0.0
        %1136 = vmatprep.subr.mxu0 0.0
        %1137 = vmatpush1.msra.mxu0 0.0
        %1138 = vmatprep.subr.mxu0 0.0
        %1139 = vmatpush1.msra.mxu0 0.0
        %1140 = vmatprep.subr.mxu0 0.0
        %1141 = vmatpush1.msra.mxu0 0.0
        %1142 = vmatprep.subr.mxu0 0.0
        %1143 = vmatpush1.msra.mxu0 0.0
        %1144 = vmatprep.subr.mxu0 0.0
        %1145 = vmatpush1.msra.mxu0 0.0
        %1146 = vmatprep.subr.mxu0 0.0
        %1147 = vmatpush1.msra.mxu0 0.0
        %1148 = vmatprep.subr.mxu0 0.0
        %1149 = vmatpush1.msra.mxu0 0.0
        %1150 = vmatprep.subr.mxu0 0.0
        %1151 = vmatpush1.msra.mxu0 0.0
        %1152 = vmatprep.subr.mxu0 0.0
        %1153 = vmatpush1.msra.mxu0 0.0
        %1154 = vmatprep.subr.mxu0 0.0
        %1155 = vmatpush1.msra.mxu0 0.0
        %1156 = vmatprep.subr.mxu0 0.0
        %1157 = vmatpush1.msra.mxu0 0.0
        %1158 = vmatprep.subr.mxu0 0.0
        %1159 = vmatpush1.msra.mxu0 0.0
        %1160 = vmatprep.subr.mxu0 0.0
        %1161 = vmatpush1.msra.mxu0 0.0
        %1162 = vmatprep.subr.mxu0 0.0
        %1163 = vmatpush1.msra.mxu0 0.0
        %1164 = vmatprep.subr.mxu0 0.0
        %1165 = vmatpush1.msra.mxu0 0.0
        %1166 = vmatprep.subr.mxu0 0.0
        %1167 = vmatpush1.msra.mxu0 0.0
        %1168 = vmatprep.subr.mxu0 0.0
        %1169 = vmatpush1.msra.mxu0 0.0
        %1170 = vmatprep.subr.mxu0 0.0
        %1171 = vmatpush1.msra.mxu0 0.0
        %1172 = vmatprep.subr.mxu0 0.0
        %1173 = vmatpush1.msra.mxu0 0.0
        %1174 = vmatprep.subr.mxu0 0.0
        %1175 = vmatpush1.msra.mxu0 0.0
        %1176 = vmatprep.subr.mxu0 0.0
        %1177 = vmatpush1.msra.mxu0 0.0
        %1178 = vmatprep.subr.mxu0 0.0
        %1179 = vmatpush1.msra.mxu0 0.0
        %1180 = vmatprep.subr.mxu0 0.0
        %1181 = vmatpush1.msra.mxu0 0.0
        %1182 = vmatprep.subr.mxu0 0.0
        %1183 = vmatpush1.msra.mxu0 0.0
        %1184 = vmatprep.mubr.f32.mxu0 0.0
        %1185 = vmatmul.mubr.f32.gmra.mrb[0].mxu0 %v1118
        %v1186 = vpop.f32.mrb[0].mxu0
        %v1187 = vadd.f32 0.0, %v1186
        %v1188 = vpop.f32.mrb[0].mxu0
        %1189 = vdwg.mxu0
        %v1190 = vrcp.pop %v1116
        %v1191 = vmul.f32 %v1187, %v1190
        %1192 = vrot.lane.b32.xlu0 %v945, 124
        %v1193 = vpop.permute.xlu0 %1192
        %v1194 = vsel %vm953, %v1193, 0
        %1196 = vmatprep.subr.mxu0 0.0
        %1197 = vmatpush1.xpose.msra.mxu0 %v958
        %1198 = vmatprep.subr.mxu0 0.0
        %1199 = vmatpush1.xpose.msra.mxu0 0.0
        %1200 = vmatprep.subr.mxu0 0.0
        %1201 = vmatpush1.xpose.msra.mxu0 0.0
        %1202 = vmatprep.subr.mxu0 0.0
        %1203 = vmatpush1.xpose.msra.mxu0 0.0
        %1204 = vmatprep.subr.mxu0 0.0
        %1205 = vmatpush1.xpose.msra.mxu0 0.0
        %1206 = vmatprep.subr.mxu0 0.0
        %1207 = vmatpush1.xpose.msra.mxu0 0.0
        %1208 = vmatprep.subr.mxu0 0.0
        %1209 = vmatpush1.xpose.msra.mxu0 0.0
        %1210 = vmatprep.subr.mxu0 0.0
        %1211 = vmatpush1.xpose.msra.mxu0 0.0
        %1212 = vmatprep.subr.mxu0 0.0
        %1213 = vmatpush1.xpose.msra.mxu0 0.0
        %1214 = vmatprep.subr.mxu0 0.0
        %1215 = vmatpush1.xpose.msra.mxu0 0.0
        %1216 = vmatprep.subr.mxu0 0.0
        %1217 = vmatpush1.xpose.msra.mxu0 0.0
        %1218 = vmatprep.subr.mxu0 0.0
        %1219 = vmatpush1.xpose.msra.mxu0 0.0
        %1220 = vmatprep.subr.mxu0 0.0
        %1221 = vmatpush1.xpose.msra.mxu0 0.0
        %1222 = vmatprep.subr.mxu0 0.0
        %1223 = vmatpush1.xpose.msra.mxu0 0.0
        %1224 = vmatprep.subr.mxu0 0.0
        %1225 = vmatpush1.xpose.msra.mxu0 0.0
        %1226 = vmatprep.subr.mxu0 0.0
        %1227 = vmatpush1.xpose.msra.mxu0 0.0
        %1228 = vmatprep.subr.mxu0 0.0
        %1229 = vmatpush1.xpose.msra.mxu0 0.0
        %1230 = vmatprep.subr.mxu0 0.0
        %1231 = vmatpush1.xpose.msra.mxu0 0.0
        %1232 = vmatprep.subr.mxu0 0.0
        %1233 = vmatpush1.xpose.msra.mxu0 0.0
        %1234 = vmatprep.subr.mxu0 0.0
        %1235 = vmatpush1.xpose.msra.mxu0 0.0
        %1236 = vmatprep.subr.mxu0 0.0
        %1237 = vmatpush1.xpose.msra.mxu0 0.0
        %1238 = vmatprep.subr.mxu0 0.0
        %1239 = vmatpush1.xpose.msra.mxu0 0.0
        %1240 = vmatprep.subr.mxu0 0.0
        %1241 = vmatpush1.xpose.msra.mxu0 0.0
        %1242 = vmatprep.subr.mxu0 0.0
        %1243 = vmatpush1.xpose.msra.mxu0 0.0
        %1244 = vmatprep.subr.mxu0 0.0
        %1245 = vmatpush1.xpose.msra.mxu0 0.0
        %1246 = vmatprep.subr.mxu0 0.0
        %1247 = vmatpush1.xpose.msra.mxu0 0.0
        %1248 = vmatprep.subr.mxu0 0.0
        %1249 = vmatpush1.xpose.msra.mxu0 0.0
        %1250 = vmatprep.subr.mxu0 0.0
        %1251 = vmatpush1.xpose.msra.mxu0 0.0
        %1252 = vmatprep.subr.mxu0 0.0
        %1253 = vmatpush1.xpose.msra.mxu0 0.0
        %1254 = vmatprep.subr.mxu0 0.0
        %1255 = vmatpush1.xpose.msra.mxu0 0.0
        %1256 = vmatprep.subr.mxu0 0.0
        %1257 = vmatpush1.xpose.msra.mxu0 0.0
        %1258 = vmatprep.subr.mxu0 0.0
        %1259 = vmatpush1.xpose.msra.mxu0 0.0
        %1260 = vmatprep.mubr.f32.mxu0 0.0
        %1261 = vmatmul.mubr.f32.gmra.mrb[0].mxu0 %v1194
        %v1262 = vpop.f32.mrb[0].mxu0
        %v1263 = vadd.f32 0.0, %v1262
        %v1264 = vpop.f32.mrb[0].mxu0
        %1265 = vdwg.mxu0
        %1266 = vrot.lane.b32.xlu0 %v942, 124
        %v1267 = vpop.permute.xlu0 %1266
        %v1268 = vsel %vm953, %v1267, 0
        %1270 = vmatprep.subr.mxu0 0.0
        %1271 = vmatpush1.xpose.msra.mxu0 %v1034
        %1272 = vmatprep.subr.mxu0 0.0
        %1273 = vmatpush1.xpose.msra.mxu0 0.0
        %1274 = vmatprep.subr.mxu0 0.0
        %1275 = vmatpush1.xpose.msra.mxu0 0.0
        %1276 = vmatprep.subr.mxu0 0.0
        %1277 = vmatpush1.xpose.msra.mxu0 0.0
        %1278 = vmatprep.subr.mxu0 0.0
        %1279 = vmatpush1.xpose.msra.mxu0 0.0
        %1280 = vmatprep.subr.mxu0 0.0
        %1281 = vmatpush1.xpose.msra.mxu0 0.0
        %1282 = vmatprep.subr.mxu0 0.0
        %1283 = vmatpush1.xpose.msra.mxu0 0.0
        %1284 = vmatprep.subr.mxu0 0.0
        %1285 = vmatpush1.xpose.msra.mxu0 0.0
        %1286 = vmatprep.subr.mxu0 0.0
        %1287 = vmatpush1.xpose.msra.mxu0 0.0
        %1288 = vmatprep.subr.mxu0 0.0
        %1289 = vmatpush1.xpose.msra.mxu0 0.0
        %1290 = vmatprep.subr.mxu0 0.0
        %1291 = vmatpush1.xpose.msra.mxu0 0.0
        %1292 = vmatprep.subr.mxu0 0.0
        %1293 = vmatpush1.xpose.msra.mxu0 0.0
        %1294 = vmatprep.subr.mxu0 0.0
        %1295 = vmatpush1.xpose.msra.mxu0 0.0
        %1296 = vmatprep.subr.mxu0 0.0
        %1297 = vmatpush1.xpose.msra.mxu0 0.0
        %1298 = vmatprep.subr.mxu0 0.0
        %1299 = vmatpush1.xpose.msra.mxu0 0.0
        %1300 = vmatprep.subr.mxu0 0.0
        %1301 = vmatpush1.xpose.msra.mxu0 0.0
        %1302 = vmatprep.subr.mxu0 0.0
        %1303 = vmatpush1.xpose.msra.mxu0 0.0
        %1304 = vmatprep.subr.mxu0 0.0
        %1305 = vmatpush1.xpose.msra.mxu0 0.0
        %1306 = vmatprep.subr.mxu0 0.0
        %1307 = vmatpush1.xpose.msra.mxu0 0.0
        %1308 = vmatprep.subr.mxu0 0.0
        %1309 = vmatpush1.xpose.msra.mxu0 0.0
        %1310 = vmatprep.subr.mxu0 0.0
        %1311 = vmatpush1.xpose.msra.mxu0 0.0
        %1312 = vmatprep.subr.mxu0 0.0
        %1313 = vmatpush1.xpose.msra.mxu0 0.0
        %1314 = vmatprep.subr.mxu0 0.0
        %1315 = vmatpush1.xpose.msra.mxu0 0.0
        %1316 = vmatprep.subr.mxu0 0.0
        %1317 = vmatpush1.xpose.msra.mxu0 0.0
        %1318 = vmatprep.subr.mxu0 0.0
        %1319 = vmatpush1.xpose.msra.mxu0 0.0
        %1320 = vmatprep.subr.mxu0 0.0
        %1321 = vmatpush1.xpose.msra.mxu0 0.0
        %1322 = vmatprep.subr.mxu0 0.0
        %1323 = vmatpush1.xpose.msra.mxu0 0.0
        %1324 = vmatprep.subr.mxu0 0.0
        %1325 = vmatpush1.xpose.msra.mxu0 0.0
        %1326 = vmatprep.subr.mxu0 0.0
        %1327 = vmatpush1.xpose.msra.mxu0 0.0
        %1328 = vmatprep.subr.mxu0 0.0
        %1329 = vmatpush1.xpose.msra.mxu0 0.0
        %1330 = vmatprep.subr.mxu0 0.0
        %1331 = vmatpush1.xpose.msra.mxu0 0.0
        %1332 = vmatprep.subr.mxu0 0.0
        %1333 = vmatpush1.xpose.msra.mxu0 0.0
        %1334 = vmatprep.mubr.f32.mxu0 0.0
        %1335 = vmatmul.mubr.f32.gmra.mrb[0].mxu0 %v1268
        %v1336 = vpop.f32.mrb[0].mxu0
        %v1337 = vadd.f32 %v1263, %v1336
        %v1338 = vpop.f32.mrb[0].mxu0
        %1339 = vdwg.mxu0
        %v1340 = vadd.f32 %v1337, %v952
        %v1341 = vsel %vm1107, %v1340, -inf
        %1342 = vmax.xlane.f32.xlu0 %v1341
        %v1343 = vpop.xlane.xlu0 %1342
        %v1344 = vsub.f32 %v1340, %v1343
        %v1345 = vmul.f32 %v1344, 1.442695
        %v1346 = vpow.pop %v1345
        %v1347 = vsel %vm1107, %v1346, 0.0
        %1348 = vadd.xlane.f32.xlu0 %v1347
        %v1349 = vpop.xlane.xlu0 %1348
        %v1351 = vsel %vm1107, %v1346, 0
        %1353 = vmatprep.subr.mxu0 0.0
        %1354 = vmatpush1.msra.mxu0 %v933
        %1355 = vmatprep.subr.mxu0 0.0
        %1356 = vmatpush1.msra.mxu0 0.0
        %1357 = vmatprep.subr.mxu0 0.0
        %1358 = vmatpush1.msra.mxu0 0.0
        %1359 = vmatprep.subr.mxu0 0.0
        %1360 = vmatpush1.msra.mxu0 0.0
        %1361 = vmatprep.subr.mxu0 0.0
        %1362 = vmatpush1.msra.mxu0 0.0
        %1363 = vmatprep.subr.mxu0 0.0
        %1364 = vmatpush1.msra.mxu0 0.0
        %1365 = vmatprep.subr.mxu0 0.0
        %1366 = vmatpush1.msra.mxu0 0.0
        %1367 = vmatprep.subr.mxu0 0.0
        %1368 = vmatpush1.msra.mxu0 0.0
        %1369 = vmatprep.subr.mxu0 0.0
        %1370 = vmatpush1.msra.mxu0 0.0
        %1371 = vmatprep.subr.mxu0 0.0
        %1372 = vmatpush1.msra.mxu0 0.0
        %1373 = vmatprep.subr.mxu0 0.0
        %1374 = vmatpush1.msra.mxu0 0.0
        %1375 = vmatprep.subr.mxu0 0.0
        %1376 = vmatpush1.msra.mxu0 0.0
        %1377 = vmatprep.subr.mxu0 0.0
        %1378 = vmatpush1.msra.mxu0 0.0
        %1379 = vmatprep.subr.mxu0 0.0
        %1380 = vmatpush1.msra.mxu0 0.0
        %1381 = vmatprep.subr.mxu0 0.0
        %1382 = vmatpush1.msra.mxu0 0.0
        %1383 = vmatprep.subr.mxu0 0.0
        %1384 = vmatpush1.msra.mxu0 0.0
        %1385 = vmatprep.subr.mxu0 0.0
        %1386 = vmatpush1.msra.mxu0 0.0
        %1387 = vmatprep.subr.mxu0 0.0
        %1388 = vmatpush1.msra.mxu0 0.0
        %1389 = vmatprep.subr.mxu0 0.0
        %1390 = vmatpush1.msra.mxu0 0.0
        %1391 = vmatprep.subr.mxu0 0.0
        %1392 = vmatpush1.msra.mxu0 0.0
        %1393 = vmatprep.subr.mxu0 0.0
        %1394 = vmatpush1.msra.mxu0 0.0
        %1395 = vmatprep.subr.mxu0 0.0
        %1396 = vmatpush1.msra.mxu0 0.0
        %1397 = vmatprep.subr.mxu0 0.0
        %1398 = vmatpush1.msra.mxu0 0.0
        %1399 = vmatprep.subr.mxu0 0.0
        %1400 = vmatpush1.msra.mxu0 0.0
        %1401 = vmatprep.subr.mxu0 0.0
        %1402 = vmatpush1.msra.mxu0 0.0
        %1403 = vmatprep.subr.mxu0 0.0
        %1404 = vmatpush1.msra.mxu0 0.0
        %1405 = vmatprep.subr.mxu0 0.0
        %1406 = vmatpush1.msra.mxu0 0.0
        %1407 = vmatprep.subr.mxu0 0.0
        %1408 = vmatpush1.msra.mxu0 0.0
        %1409 = vmatprep.subr.mxu0 0.0
        %1410 = vmatpush1.msra.mxu0 0.0
        %1411 = vmatprep.subr.mxu0 0.0
        %1412 = vmatpush1.msra.mxu0 0.0
        %1413 = vmatprep.subr.mxu0 0.0
        %1414 = vmatpush1.msra.mxu0 0.0
        %1415 = vmatprep.subr.mxu0 0.0
        %1416 = vmatpush1.msra.mxu0 0.0
        %1417 = vmatprep.mubr.f32.mxu0 0.0
        %1418 = vmatmul.mubr.f32.gmra.mrb[0].mxu0 %v1351
        %v1419 = vpop.f32.mrb[0].mxu0
        %v1420 = vadd.f32 0.0, %v1419
        %v1421 = vpop.f32.mrb[0].mxu0
        %1422 = vdwg.mxu0
        %v1423 = vrcp.pop %v1349
        %v1424 = vmul.f32 %v1420, %v1423
        %1425 = vrot.lane.b32.xlu0 %v945, 120
        %v1426 = vpop.permute.xlu0 %1425
        %1427 = vrot.lane.b32.xlu0 %v951, 124
        %v1428 = vpop.permute.xlu0 %1427
        %v1429 = vsel %vm953, %v1426, 0
        %v1431 = vsel %vm953, %v1428, 0
        %1433 = vmatprep.subr.mxu0 0.0
        %1434 = vmatpush1.xpose.msra.mxu0 %v1431
        %1435 = vmatprep.subr.mxu0 0.0
        %1436 = vmatpush1.xpose.msra.mxu0 0.0
        %1437 = vmatprep.subr.mxu0 0.0
        %1438 = vmatpush1.xpose.msra.mxu0 0.0
        %1439 = vmatprep.subr.mxu0 0.0
        %1440 = vmatpush1.xpose.msra.mxu0 0.0
        %1441 = vmatprep.subr.mxu0 0.0
        %1442 = vmatpush1.xpose.msra.mxu0 0.0
        %1443 = vmatprep.subr.mxu0 0.0
        %1444 = vmatpush1.xpose.msra.mxu0 0.0
        %1445 = vmatprep.subr.mxu0 0.0
        %1446 = vmatpush1.xpose.msra.mxu0 0.0
        %1447 = vmatprep.subr.mxu0 0.0
        %1448 = vmatpush1.xpose.msra.mxu0 0.0
        %1449 = vmatprep.subr.mxu0 0.0
        %1450 = vmatpush1.xpose.msra.mxu0 0.0
        %1451 = vmatprep.subr.mxu0 0.0
        %1452 = vmatpush1.xpose.msra.mxu0 0.0
        %1453 = vmatprep.subr.mxu0 0.0
        %1454 = vmatpush1.xpose.msra.mxu0 0.0
        %1455 = vmatprep.subr.mxu0 0.0
        %1456 = vmatpush1.xpose.msra.mxu0 0.0
        %1457 = vmatprep.subr.mxu0 0.0
        %1458 = vmatpush1.xpose.msra.mxu0 0.0
        %1459 = vmatprep.subr.mxu0 0.0
        %1460 = vmatpush1.xpose.msra.mxu0 0.0
        %1461 = vmatprep.subr.mxu0 0.0
        %1462 = vmatpush1.xpose.msra.mxu0 0.0
        %1463 = vmatprep.subr.mxu0 0.0
        %1464 = vmatpush1.xpose.msra.mxu0 0.0
        %1465 = vmatprep.subr.mxu0 0.0
        %1466 = vmatpush1.xpose.msra.mxu0 0.0
        %1467 = vmatprep.subr.mxu0 0.0
        %1468 = vmatpush1.xpose.msra.mxu0 0.0
        %1469 = vmatprep.subr.mxu0 0.0
        %1470 = vmatpush1.xpose.msra.mxu0 0.0
        %1471 = vmatprep.subr.mxu0 0.0
        %1472 = vmatpush1.xpose.msra.mxu0 0.0
        %1473 = vmatprep.subr.mxu0 0.0
        %1474 = vmatpush1.xpose.msra.mxu0 0.0
        %1475 = vmatprep.subr.mxu0 0.0
        %1476 = vmatpush1.xpose.msra.mxu0 0.0
        %1477 = vmatprep.subr.mxu0 0.0
        %1478 = vmatpush1.xpose.msra.mxu0 0.0
        %1479 = vmatprep.subr.mxu0 0.0
        %1480 = vmatpush1.xpose.msra.mxu0 0.0
        %1481 = vmatprep.subr.mxu0 0.0
        %1482 = vmatpush1.xpose.msra.mxu0 0.0
        %1483 = vmatprep.subr.mxu0 0.0
        %1484 = vmatpush1.xpose.msra.mxu0 0.0
        %1485 = vmatprep.subr.mxu0 0.0
        %1486 = vmatpush1.xpose.msra.mxu0 0.0
        %1487 = vmatprep.subr.mxu0 0.0
        %1488 = vmatpush1.xpose.msra.mxu0 0.0
        %1489 = vmatprep.subr.mxu0 0.0
        %1490 = vmatpush1.xpose.msra.mxu0 0.0
        %1491 = vmatprep.subr.mxu0 0.0
        %1492 = vmatpush1.xpose.msra.mxu0 0.0
        %1493 = vmatprep.subr.mxu0 0.0
        %1494 = vmatpush1.xpose.msra.mxu0 0.0
        %1495 = vmatprep.subr.mxu0 0.0
        %1496 = vmatpush1.xpose.msra.mxu0 0.0
        %1497 = vmatprep.mubr.f32.mxu0 0.0
        %1498 = vmatmul.mubr.f32.gmra.mrb[0].mxu0 %v1429
        %v1499 = vpop.f32.mrb[0].mxu0
        %v1500 = vadd.f32 0.0, %v1499
        %v1501 = vpop.f32.mrb[0].mxu0
        %1502 = vdwg.mxu0
        %1503 = vrot.lane.b32.xlu0 %v942, 120
        %v1504 = vpop.permute.xlu0 %1503
        %1505 = vrot.lane.b32.xlu0 %v948, 124
        %v1506 = vpop.permute.xlu0 %1505
        %v1507 = vsel %vm953, %v1504, 0
        %v1509 = vsel %vm953, %v1506, 0
        %1511 = vmatprep.subr.mxu0 0.0
        %1512 = vmatpush1.xpose.msra.mxu0 %v1509
        %1513 = vmatprep.subr.mxu0 0.0
        %1514 = vmatpush1.xpose.msra.mxu0 0.0
        %1515 = vmatprep.subr.mxu0 0.0
        %1516 = vmatpush1.xpose.msra.mxu0 0.0
        %1517 = vmatprep.subr.mxu0 0.0
        %1518 = vmatpush1.xpose.msra.mxu0 0.0
        %1519 = vmatprep.subr.mxu0 0.0
        %1520 = vmatpush1.xpose.msra.mxu0 0.0
        %1521 = vmatprep.subr.mxu0 0.0
        %1522 = vmatpush1.xpose.msra.mxu0 0.0
        %1523 = vmatprep.subr.mxu0 0.0
        %1524 = vmatpush1.xpose.msra.mxu0 0.0
        %1525 = vmatprep.subr.mxu0 0.0
        %1526 = vmatpush1.xpose.msra.mxu0 0.0
        %1527 = vmatprep.subr.mxu0 0.0
        %1528 = vmatpush1.xpose.msra.mxu0 0.0
        %1529 = vmatprep.subr.mxu0 0.0
        %1530 = vmatpush1.xpose.msra.mxu0 0.0
        %1531 = vmatprep.subr.mxu0 0.0
        %1532 = vmatpush1.xpose.msra.mxu0 0.0
        %1533 = vmatprep.subr.mxu0 0.0
        %1534 = vmatpush1.xpose.msra.mxu0 0.0
        %1535 = vmatprep.subr.mxu0 0.0
        %1536 = vmatpush1.xpose.msra.mxu0 0.0
        %1537 = vmatprep.subr.mxu0 0.0
        %1538 = vmatpush1.xpose.msra.mxu0 0.0
        %1539 = vmatprep.subr.mxu0 0.0
        %1540 = vmatpush1.xpose.msra.mxu0 0.0
        %1541 = vmatprep.subr.mxu0 0.0
        %1542 = vmatpush1.xpose.msra.mxu0 0.0
        %1543 = vmatprep.subr.mxu0 0.0
        %1544 = vmatpush1.xpose.msra.mxu0 0.0
        %1545 = vmatprep.subr.mxu0 0.0
        %1546 = vmatpush1.xpose.msra.mxu0 0.0
        %1547 = vmatprep.subr.mxu0 0.0
        %1548 = vmatpush1.xpose.msra.mxu0 0.0
        %1549 = vmatprep.subr.mxu0 0.0
        %1550 = vmatpush1.xpose.msra.mxu0 0.0
        %1551 = vmatprep.subr.mxu0 0.0
        %1552 = vmatpush1.xpose.msra.mxu0 0.0
        %1553 = vmatprep.subr.mxu0 0.0
        %1554 = vmatpush1.xpose.msra.mxu0 0.0
        %1555 = vmatprep.subr.mxu0 0.0
        %1556 = vmatpush1.xpose.msra.mxu0 0.0
        %1557 = vmatprep.subr.mxu0 0.0
        %1558 = vmatpush1.xpose.msra.mxu0 0.0
        %1559 = vmatprep.subr.mxu0 0.0
        %1560 = vmatpush1.xpose.msra.mxu0 0.0
        %1561 = vmatprep.subr.mxu0 0.0
        %1562 = vmatpush1.xpose.msra.mxu0 0.0
        %1563 = vmatprep.subr.mxu0 0.0
        %1564 = vmatpush1.xpose.msra.mxu0 0.0
        %1565 = vmatprep.subr.mxu0 0.0
        %1566 = vmatpush1.xpose.msra.mxu0 0.0
        %1567 = vmatprep.subr.mxu0 0.0
        %1568 = vmatpush1.xpose.msra.mxu0 0.0
        %1569 = vmatprep.subr.mxu0 0.0
        %1570 = vmatpush1.xpose.msra.mxu0 0.0
        %1571 = vmatprep.subr.mxu0 0.0
        %1572 = vmatpush1.xpose.msra.mxu0 0.0
        %1573 = vmatprep.subr.mxu0 0.0
        %1574 = vmatpush1.xpose.msra.mxu0 0.0
        %1575 = vmatprep.mubr.f32.mxu0 0.0
        %1576 = vmatmul.mubr.f32.gmra.mrb[0].mxu0 %v1507
        %v1577 = vpop.f32.mrb[0].mxu0
        %v1578 = vadd.f32 %v1500, %v1577
        %v1579 = vpop.f32.mrb[0].mxu0
        %1580 = vdwg.mxu0
        %v1581 = vadd.f32 %v1578, %v952
        %v1582 = vsel %vm1107, %v1581, -inf
        %1583 = vmax.xlane.f32.xlu0 %v1582
        %v1584 = vpop.xlane.xlu0 %1583
        %v1585 = vsub.f32 %v1581, %v1584
        %v1586 = vmul.f32 %v1585, 1.442695
        %v1587 = vpow.pop %v1586
        %v1588 = vsel %vm1107, %v1587, 0.0
        %1589 = vadd.xlane.f32.xlu0 %v1588
        %v1590 = vpop.xlane.xlu0 %1589
        %1592 = vrot.lane.b32.xlu0 %v933, 120
        %v1593 = vpop.permute.xlu0 %1592
        %v1596 = vsel %vm1107, %v1587, 0
        %1598 = vmatprep.subr.mxu0 0.0
        %1599 = vmatpush1.msra.mxu0 %v1593
        %1600 = vmatprep.subr.mxu0 0.0
        %1601 = vmatpush1.msra.mxu0 0.0
        %1602 = vmatprep.subr.mxu0 0.0
        %1603 = vmatpush1.msra.mxu0 0.0
        %1604 = vmatprep.subr.mxu0 0.0
        %1605 = vmatpush1.msra.mxu0 0.0
        %1606 = vmatprep.subr.mxu0 0.0
        %1607 = vmatpush1.msra.mxu0 0.0
        %1608 = vmatprep.subr.mxu0 0.0
        %1609 = vmatpush1.msra.mxu0 0.0
        %1610 = vmatprep.subr.mxu0 0.0
        %1611 = vmatpush1.msra.mxu0 0.0
        %1612 = vmatprep.subr.mxu0 0.0
        %1613 = vmatpush1.msra.mxu0 0.0
        %1614 = vmatprep.subr.mxu0 0.0
        %1615 = vmatpush1.msra.mxu0 0.0
        %1616 = vmatprep.subr.mxu0 0.0
        %1617 = vmatpush1.msra.mxu0 0.0
        %1618 = vmatprep.subr.mxu0 0.0
        %1619 = vmatpush1.msra.mxu0 0.0
        %1620 = vmatprep.subr.mxu0 0.0
        %1621 = vmatpush1.msra.mxu0 0.0
        %1622 = vmatprep.subr.mxu0 0.0
        %1623 = vmatpush1.msra.mxu0 0.0
        %1624 = vmatprep.subr.mxu0 0.0
        %1625 = vmatpush1.msra.mxu0 0.0
        %1626 = vmatprep.subr.mxu0 0.0
        %1627 = vmatpush1.msra.mxu0 0.0
        %1628 = vmatprep.subr.mxu0 0.0
        %1629 = vmatpush1.msra.mxu0 0.0
        %1630 = vmatprep.subr.mxu0 0.0
        %1631 = vmatpush1.msra.mxu0 0.0
        %1632 = vmatprep.subr.mxu0 0.0
        %1633 = vmatpush1.msra.mxu0 0.0
        %1634 = vmatprep.subr.mxu0 0.0
        %1635 = vmatpush1.msra.mxu0 0.0
        %1636 = vmatprep.subr.mxu0 0.0
        %1637 = vmatpush1.msra.mxu0 0.0
        %1638 = vmatprep.subr.mxu0 0.0
        %1639 = vmatpush1.msra.mxu0 0.0
        %1640 = vmatprep.subr.mxu0 0.0
        %1641 = vmatpush1.msra.mxu0 0.0
        %1642 = vmatprep.subr.mxu0 0.0
        %1643 = vmatpush1.msra.mxu0 0.0
        %1644 = vmatprep.subr.mxu0 0.0
        %1645 = vmatpush1.msra.mxu0 0.0
        %1646 = vmatprep.subr.mxu0 0.0
        %1647 = vmatpush1.msra.mxu0 0.0
        %1648 = vmatprep.subr.mxu0 0.0
        %1649 = vmatpush1.msra.mxu0 0.0
        %1650 = vmatprep.subr.mxu0 0.0
        %1651 = vmatpush1.msra.mxu0 0.0
        %1652 = vmatprep.subr.mxu0 0.0
        %1653 = vmatpush1.msra.mxu0 0.0
        %1654 = vmatprep.subr.mxu0 0.0
        %1655 = vmatpush1.msra.mxu0 0.0
        %1656 = vmatprep.subr.mxu0 0.0
        %1657 = vmatpush1.msra.mxu0 0.0
        %1658 = vmatprep.subr.mxu0 0.0
        %1659 = vmatpush1.msra.mxu0 0.0
        %1660 = vmatprep.subr.mxu0 0.0
        %1661 = vmatpush1.msra.mxu0 0.0
        %1662 = vmatprep.mubr.f32.mxu0 0.0
        %1663 = vmatmul.mubr.f32.gmra.mrb[0].mxu0 %v1596
        %v1664 = vpop.f32.mrb[0].mxu0
        %v1665 = vadd.f32 0.0, %v1664
        %v1666 = vpop.f32.mrb[0].mxu0
        %1667 = vdwg.mxu0
        %v1668 = vrcp.pop %v1590
        %v1669 = vmul.f32 %v1665, %v1668
        %1670 = vrot.lane.b32.xlu0 %v945, 116
        %v1671 = vpop.permute.xlu0 %1670
        %v1672 = vsel %vm953, %v1671, 0
        %1674 = vmatprep.subr.mxu0 0.0
        %1675 = vmatpush1.xpose.msra.mxu0 %v1431
        %1676 = vmatprep.subr.mxu0 0.0
        %1677 = vmatpush1.xpose.msra.mxu0 0.0
        %1678 = vmatprep.subr.mxu0 0.0
        %1679 = vmatpush1.xpose.msra.mxu0 0.0
        %1680 = vmatprep.subr.mxu0 0.0
        %1681 = vmatpush1.xpose.msra.mxu0 0.0
        %1682 = vmatprep.subr.mxu0 0.0
        %1683 = vmatpush1.xpose.msra.mxu0 0.0
        %1684 = vmatprep.subr.mxu0 0.0
        %1685 = vmatpush1.xpose.msra.mxu0 0.0
        %1686 = vmatprep.subr.mxu0 0.0
        %1687 = vmatpush1.xpose.msra.mxu0 0.0
        %1688 = vmatprep.subr.mxu0 0.0
        %1689 = vmatpush1.xpose.msra.mxu0 0.0
        %1690 = vmatprep.subr.mxu0 0.0
        %1691 = vmatpush1.xpose.msra.mxu0 0.0
        %1692 = vmatprep.subr.mxu0 0.0
        %1693 = vmatpush1.xpose.msra.mxu0 0.0
        %1694 = vmatprep.subr.mxu0 0.0
        %1695 = vmatpush1.xpose.msra.mxu0 0.0
        %1696 = vmatprep.subr.mxu0 0.0
        %1697 = vmatpush1.xpose.msra.mxu0 0.0
        %1698 = vmatprep.subr.mxu0 0.0
        %1699 = vmatpush1.xpose.msra.mxu0 0.0
        %1700 = vmatprep.subr.mxu0 0.0
        %1701 = vmatpush1.xpose.msra.mxu0 0.0
        %1702 = vmatprep.subr.mxu0 0.0
        %1703 = vmatpush1.xpose.msra.mxu0 0.0
        %1704 = vmatprep.subr.mxu0 0.0
        %1705 = vmatpush1.xpose.msra.mxu0 0.0
        %1706 = vmatprep.subr.mxu0 0.0
        %1707 = vmatpush1.xpose.msra.mxu0 0.0
        %1708 = vmatprep.subr.mxu0 0.0
        %1709 = vmatpush1.xpose.msra.mxu0 0.0
        %1710 = vmatprep.subr.mxu0 0.0
        %1711 = vmatpush1.xpose.msra.mxu0 0.0
        %1712 = vmatprep.subr.mxu0 0.0
        %1713 = vmatpush1.xpose.msra.mxu0 0.0
        %1714 = vmatprep.subr.mxu0 0.0
        %1715 = vmatpush1.xpose.msra.mxu0 0.0
        %1716 = vmatprep.subr.mxu0 0.0
        %1717 = vmatpush1.xpose.msra.mxu0 0.0
        %1718 = vmatprep.subr.mxu0 0.0
        %1719 = vmatpush1.xpose.msra.mxu0 0.0
        %1720 = vmatprep.subr.mxu0 0.0
        %1721 = vmatpush1.xpose.msra.mxu0 0.0
        %1722 = vmatprep.subr.mxu0 0.0
        %1723 = vmatpush1.xpose.msra.mxu0 0.0
        %1724 = vmatprep.subr.mxu0 0.0
        %1725 = vmatpush1.xpose.msra.mxu0 0.0
        %1726 = vmatprep.subr.mxu0 0.0
        %1727 = vmatpush1.xpose.msra.mxu0 0.0
        %1728 = vmatprep.subr.mxu0 0.0
        %1729 = vmatpush1.xpose.msra.mxu0 0.0
        %1730 = vmatprep.subr.mxu0 0.0
        %1731 = vmatpush1.xpose.msra.mxu0 0.0
        %1732 = vmatprep.subr.mxu0 0.0
        %1733 = vmatpush1.xpose.msra.mxu0 0.0
        %1734 = vmatprep.subr.mxu0 0.0
        %1735 = vmatpush1.xpose.msra.mxu0 0.0
        %1736 = vmatprep.subr.mxu0 0.0
        %1737 = vmatpush1.xpose.msra.mxu0 0.0
        %1738 = vmatprep.mubr.f32.mxu0 0.0
        %1739 = vmatmul.mubr.f32.gmra.mrb[0].mxu0 %v1672
        %v1740 = vpop.f32.mrb[0].mxu0
        %v1741 = vadd.f32 0.0, %v1740
        %v1742 = vpop.f32.mrb[0].mxu0
        %1743 = vdwg.mxu0
        %1744 = vrot.lane.b32.xlu0 %v942, 116
        %v1745 = vpop.permute.xlu0 %1744
        %v1746 = vsel %vm953, %v1745, 0
        %1748 = vmatprep.subr.mxu0 0.0
        %1749 = vmatpush1.xpose.msra.mxu0 %v1509
        %1750 = vmatprep.subr.mxu0 0.0
        %1751 = vmatpush1.xpose.msra.mxu0 0.0
        %1752 = vmatprep.subr.mxu0 0.0
        %1753 = vmatpush1.xpose.msra.mxu0 0.0
        %1754 = vmatprep.subr.mxu0 0.0
        %1755 = vmatpush1.xpose.msra.mxu0 0.0
        %1756 = vmatprep.subr.mxu0 0.0
        %1757 = vmatpush1.xpose.msra.mxu0 0.0
        %1758 = vmatprep.subr.mxu0 0.0
        %1759 = vmatpush1.xpose.msra.mxu0 0.0
        %1760 = vmatprep.subr.mxu0 0.0
        %1761 = vmatpush1.xpose.msra.mxu0 0.0
        %1762 = vmatprep.subr.mxu0 0.0
        %1763 = vmatpush1.xpose.msra.mxu0 0.0
        %1764 = vmatprep.subr.mxu0 0.0
        %1765 = vmatpush1.xpose.msra.mxu0 0.0
        %1766 = vmatprep.subr.mxu0 0.0
        %1767 = vmatpush1.xpose.msra.mxu0 0.0
        %1768 = vmatprep.subr.mxu0 0.0
        %1769 = vmatpush1.xpose.msra.mxu0 0.0
        %1770 = vmatprep.subr.mxu0 0.0
        %1771 = vmatpush1.xpose.msra.mxu0 0.0
        %1772 = vmatprep.subr.mxu0 0.0
        %1773 = vmatpush1.xpose.msra.mxu0 0.0
        %1774 = vmatprep.subr.mxu0 0.0
        %1775 = vmatpush1.xpose.msra.mxu0 0.0
        %1776 = vmatprep.subr.mxu0 0.0
        %1777 = vmatpush1.xpose.msra.mxu0 0.0
        %1778 = vmatprep.subr.mxu0 0.0
        %1779 = vmatpush1.xpose.msra.mxu0 0.0
        %1780 = vmatprep.subr.mxu0 0.0
        %1781 = vmatpush1.xpose.msra.mxu0 0.0
        %1782 = vmatprep.subr.mxu0 0.0
        %1783 = vmatpush1.xpose.msra.mxu0 0.0
        %1784 = vmatprep.subr.mxu0 0.0
        %1785 = vmatpush1.xpose.msra.mxu0 0.0
        %1786 = vmatprep.subr.mxu0 0.0
        %1787 = vmatpush1.xpose.msra.mxu0 0.0
        %1788 = vmatprep.subr.mxu0 0.0
        %1789 = vmatpush1.xpose.msra.mxu0 0.0
        %1790 = vmatprep.subr.mxu0 0.0
        %1791 = vmatpush1.xpose.msra.mxu0 0.0
        %1792 = vmatprep.subr.mxu0 0.0
        %1793 = vmatpush1.xpose.msra.mxu0 0.0
        %1794 = vmatprep.subr.mxu0 0.0
        %1795 = vmatpush1.xpose.msra.mxu0 0.0
        %1796 = vmatprep.subr.mxu0 0.0
        %1797 = vmatpush1.xpose.msra.mxu0 0.0
        %1798 = vmatprep.subr.mxu0 0.0
        %1799 = vmatpush1.xpose.msra.mxu0 0.0
        %1800 = vmatprep.subr.mxu0 0.0
        %1801 = vmatpush1.xpose.msra.mxu0 0.0
        %1802 = vmatprep.subr.mxu0 0.0
        %1803 = vmatpush1.xpose.msra.mxu0 0.0
        %1804 = vmatprep.subr.mxu0 0.0
        %1805 = vmatpush1.xpose.msra.mxu0 0.0
        %1806 = vmatprep.subr.mxu0 0.0
        %1807 = vmatpush1.xpose.msra.mxu0 0.0
        %1808 = vmatprep.subr.mxu0 0.0
        %1809 = vmatpush1.xpose.msra.mxu0 0.0
        %1810 = vmatprep.subr.mxu0 0.0
        %1811 = vmatpush1.xpose.msra.mxu0 0.0
        %1812 = vmatprep.mubr.f32.mxu0 0.0
        %1813 = vmatmul.mubr.f32.gmra.mrb[0].mxu0 %v1746
        %v1814 = vpop.f32.mrb[0].mxu0
        %v1815 = vadd.f32 %v1741, %v1814
        %v1816 = vpop.f32.mrb[0].mxu0
        %1817 = vdwg.mxu0
        %v1818 = vadd.f32 %v1815, %v952
        %v1819 = vsel %vm1107, %v1818, -inf
        %1820 = vmax.xlane.f32.xlu0 %v1819
        %v1821 = vpop.xlane.xlu0 %1820
        %v1822 = vsub.f32 %v1818, %v1821
        %v1823 = vmul.f32 %v1822, 1.442695
        %v1824 = vpow.pop %v1823
        %v1825 = vsel %vm1107, %v1824, 0.0
        %1826 = vadd.xlane.f32.xlu0 %v1825
        %v1827 = vpop.xlane.xlu0 %1826
        %v1829 = vsel %vm1107, %v1824, 0
        %1831 = vmatprep.subr.mxu0 0.0
        %1832 = vmatpush1.msra.mxu0 %v1593
        %1833 = vmatprep.subr.mxu0 0.0
        %1834 = vmatpush1.msra.mxu0 0.0
        %1835 = vmatprep.subr.mxu0 0.0
        %1836 = vmatpush1.msra.mxu0 0.0
        %1837 = vmatprep.subr.mxu0 0.0
        %1838 = vmatpush1.msra.mxu0 0.0
        %1839 = vmatprep.subr.mxu0 0.0
        %1840 = vmatpush1.msra.mxu0 0.0
        %1841 = vmatprep.subr.mxu0 0.0
        %1842 = vmatpush1.msra.mxu0 0.0
        %1843 = vmatprep.subr.mxu0 0.0
        %1844 = vmatpush1.msra.mxu0 0.0
        %1845 = vmatprep.subr.mxu0 0.0
        %1846 = vmatpush1.msra.mxu0 0.0
        %1847 = vmatprep.subr.mxu0 0.0
        %1848 = vmatpush1.msra.mxu0 0.0
        %1849 = vmatprep.subr.mxu0 0.0
        %1850 = vmatpush1.msra.mxu0 0.0
        %1851 = vmatprep.subr.mxu0 0.0
        %1852 = vmatpush1.msra.mxu0 0.0
        %1853 = vmatprep.subr.mxu0 0.0
        %1854 = vmatpush1.msra.mxu0 0.0
        %1855 = vmatprep.subr.mxu0 0.0
        %1856 = vmatpush1.msra.mxu0 0.0
        %1857 = vmatprep.subr.mxu0 0.0
        %1858 = vmatpush1.msra.mxu0 0.0
        %1859 = vmatprep.subr.mxu0 0.0
        %1860 = vmatpush1.msra.mxu0 0.0
        %1861 = vmatprep.subr.mxu0 0.0
        %1862 = vmatpush1.msra.mxu0 0.0
        %1863 = vmatprep.subr.mxu0 0.0
        %1864 = vmatpush1.msra.mxu0 0.0
        %1865 = vmatprep.subr.mxu0 0.0
        %1866 = vmatpush1.msra.mxu0 0.0
        %1867 = vmatprep.subr.mxu0 0.0
        %1868 = vmatpush1.msra.mxu0 0.0
        %1869 = vmatprep.subr.mxu0 0.0
        %1870 = vmatpush1.msra.mxu0 0.0
        %1871 = vmatprep.subr.mxu0 0.0
        %1872 = vmatpush1.msra.mxu0 0.0
        %1873 = vmatprep.subr.mxu0 0.0
        %1874 = vmatpush1.msra.mxu0 0.0
        %1875 = vmatprep.subr.mxu0 0.0
        %1876 = vmatpush1.msra.mxu0 0.0
        %1877 = vmatprep.subr.mxu0 0.0
        %1878 = vmatpush1.msra.mxu0 0.0
        %1879 = vmatprep.subr.mxu0 0.0
        %1880 = vmatpush1.msra.mxu0 0.0
        %1881 = vmatprep.subr.mxu0 0.0
        %1882 = vmatpush1.msra.mxu0 0.0
        %1883 = vmatprep.subr.mxu0 0.0
        %1884 = vmatpush1.msra.mxu0 0.0
        %1885 = vmatprep.subr.mxu0 0.0
        %1886 = vmatpush1.msra.mxu0 0.0
        %1887 = vmatprep.subr.mxu0 0.0
        %1888 = vmatpush1.msra.mxu0 0.0
        %1889 = vmatprep.subr.mxu0 0.0
        %1890 = vmatpush1.msra.mxu0 0.0
        %1891 = vmatprep.subr.mxu0 0.0
        %1892 = vmatpush1.msra.mxu0 0.0
        %1893 = vmatprep.subr.mxu0 0.0
        %1894 = vmatpush1.msra.mxu0 0.0
        %1895 = vmatprep.mubr.f32.mxu0 0.0
        %1896 = vmatmul.mubr.f32.gmra.mrb[0].mxu0 %v1829
        %v1897 = vpop.f32.mrb[0].mxu0
        %v1898 = vadd.f32 0.0, %v1897
        %v1899 = vpop.f32.mrb[0].mxu0
        %1900 = vdwg.mxu0
        %v1901 = vrcp.pop %v1827
        %v1902 = vmul.f32 %v1898, %v1901
        %1904 = vrot.lane.b32.xlu0 %v1424, 8
        %v1905 = vpop.permute.xlu0 %1904
        %1908 = vrot.lane.b32.xlu0 %v1669, 16
        %v1909 = vpop.permute.xlu0 %1908
        %1912 = vrot.lane.b32.xlu0 %v1902, 24
        %v1913 = vpop.permute.xlu0 %1912
        %v1915 = vsel %vm1107, %v1191, %v1905
        %vm1916 = vcmask 130048
        %v1917 = vsel %vm1916, %v1915, %v1909
        %vm1918 = vcmask 195584
        %v1919 = vsel %vm1918, %v1917, %v1913
        %v1920 = vld [vmem:[%s8] sm:$0xff]
        %v1921 = vld [vmem:[%s8 + $0x8] sm:$0xff]
        %v1922 = vld [vmem:[%s8 + $0x10] sm:$0xff]
        %v1923 = vld [vmem:[%s8 + $0x18] sm:$0xff]
        %v1925 = vsel %vm547, %v1919, 0
        %1927 = vmatprep.subr.mxu0 0.0
        %1928 = vmatpush1.msra.mxu0 %v1920
        %1929 = vmatprep.subr.mxu0 0.0
        %1930 = vmatpush1.msra.mxu0 %v1921
        %1931 = vmatprep.subr.mxu0 0.0
        %1932 = vmatpush1.msra.mxu0 %v1922
        %1933 = vmatprep.subr.mxu0 0.0
        %1934 = vmatpush1.msra.mxu0 %v1923
        %1935 = vmatprep.subr.mxu0 0.0
        %1936 = vmatpush1.msra.mxu0 0.0
        %1937 = vmatprep.subr.mxu0 0.0
        %1938 = vmatpush1.msra.mxu0 0.0
        %1939 = vmatprep.subr.mxu0 0.0
        %1940 = vmatpush1.msra.mxu0 0.0
        %1941 = vmatprep.subr.mxu0 0.0
        %1942 = vmatpush1.msra.mxu0 0.0
        %1943 = vmatprep.subr.mxu0 0.0
        %1944 = vmatpush1.msra.mxu0 0.0
        %1945 = vmatprep.subr.mxu0 0.0
        %1946 = vmatpush1.msra.mxu0 0.0
        %1947 = vmatprep.subr.mxu0 0.0
        %1948 = vmatpush1.msra.mxu0 0.0
        %1949 = vmatprep.subr.mxu0 0.0
        %1950 = vmatpush1.msra.mxu0 0.0
        %1951 = vmatprep.subr.mxu0 0.0
        %1952 = vmatpush1.msra.mxu0 0.0
        %1953 = vmatprep.subr.mxu0 0.0
        %1954 = vmatpush1.msra.mxu0 0.0
        %1955 = vmatprep.subr.mxu0 0.0
        %1956 = vmatpush1.msra.mxu0 0.0
        %1957 = vmatprep.subr.mxu0 0.0
        %1958 = vmatpush1.msra.mxu0 0.0
        %1959 = vmatprep.subr.mxu0 0.0
        %1960 = vmatpush1.msra.mxu0 0.0
        %1961 = vmatprep.subr.mxu0 0.0
        %1962 = vmatpush1.msra.mxu0 0.0
        %1963 = vmatprep.subr.mxu0 0.0
        %1964 = vmatpush1.msra.mxu0 0.0
        %1965 = vmatprep.subr.mxu0 0.0
        %1966 = vmatpush1.msra.mxu0 0.0
        %1967 = vmatprep.subr.mxu0 0.0
        %1968 = vmatpush1.msra.mxu0 0.0
        %1969 = vmatprep.subr.mxu0 0.0
        %1970 = vmatpush1.msra.mxu0 0.0
        %1971 = vmatprep.subr.mxu0 0.0
        %1972 = vmatpush1.msra.mxu0 0.0
        %1973 = vmatprep.subr.mxu0 0.0
        %1974 = vmatpush1.msra.mxu0 0.0
        %1975 = vmatprep.subr.mxu0 0.0
        %1976 = vmatpush1.msra.mxu0 0.0
        %1977 = vmatprep.subr.mxu0 0.0
        %1978 = vmatpush1.msra.mxu0 0.0
        %1979 = vmatprep.subr.mxu0 0.0
        %1980 = vmatpush1.msra.mxu0 0.0
        %1981 = vmatprep.subr.mxu0 0.0
        %1982 = vmatpush1.msra.mxu0 0.0
        %1983 = vmatprep.subr.mxu0 0.0
        %1984 = vmatpush1.msra.mxu0 0.0
        %1985 = vmatprep.subr.mxu0 0.0
        %1986 = vmatpush1.msra.mxu0 0.0
        %1987 = vmatprep.subr.mxu0 0.0
        %1988 = vmatpush1.msra.mxu0 0.0
        %1989 = vmatprep.subr.mxu0 0.0
        %1990 = vmatpush1.msra.mxu0 0.0
        %1991 = vmatprep.mubr.f32.mxu0 0.0
        %1992 = vmatmul.mubr.f32.gmra.mrb[0].mxu0 %v1925
        %v1993 = vpop.f32.mrb[0].mxu0
        %v1994 = vadd.f32 0.0, %v1993
        %v1995 = vpop.f32.mrb[0].mxu0
        %1996 = vdwg.mxu0
        %v1997 = vadd.f32 %v544, %v1994
        %v1998 = vld [vmem:[%s2] sm:$0x1]
        %v1999 = vmul.f32 %v1997, %v1997
        %v2000 = vsel %vm547, %v1999, 0.0
        %2001 = vadd.xlane.f32.xlu0 %v2000
        %v2002 = vpop.xlane.xlu0 %2001
        %v2003 = vmul.f32 %v2002, %v551
        %v2004 = vadd.f32 %v2003, 1e-05
        %v2005 = vrsqrt.pop %v2004
        %v2006 = vmul.f32 %v1997, %v2005
        %v2008 = vlaneseq
        %v2009 = vshrl.u32 %v2008, 7
        %v2010 = vsub.s32 0, %v2009
        %v2011 = vrot.slane %v1998, %v2010
        %v2013 = vmul.f32 %v2006, %v2011
        %v2014 = vld [vmem:[%s9] sm:$0xff]
        %v2015 = vld [vmem:[%s9 + $0x8] sm:$0xff]
        %v2016 = vld [vmem:[%s9 + $0x10] sm:$0xff]
        %v2017 = vld [vmem:[%s9 + $0x18] sm:$0xff]
        %v2019 = vsel %vm547, %v2013, 0
        %2021 = vmatprep.subr.mxu0 0.0
        %2022 = vmatpush1.msra.mxu0 %v2014
        %2023 = vmatprep.subr.mxu0 0.0
        %2024 = vmatpush1.msra.mxu0 %v2015
        %2025 = vmatprep.subr.mxu0 0.0
        %2026 = vmatpush1.msra.mxu0 %v2016
        %2027 = vmatprep.subr.mxu0 0.0
        %2028 = vmatpush1.msra.mxu0 %v2017
        %2029 = vmatprep.subr.mxu0 0.0
        %2030 = vmatpush1.msra.mxu0 0.0
        %2031 = vmatprep.subr.mxu0 0.0
        %2032 = vmatpush1.msra.mxu0 0.0
        %2033 = vmatprep.subr.mxu0 0.0
        %2034 = vmatpush1.msra.mxu0 0.0
        %2035 = vmatprep.subr.mxu0 0.0
        %2036 = vmatpush1.msra.mxu0 0.0
        %2037 = vmatprep.subr.mxu0 0.0
        %2038 = vmatpush1.msra.mxu0 0.0
        %2039 = vmatprep.subr.mxu0 0.0
        %2040 = vmatpush1.msra.mxu0 0.0
        %2041 = vmatprep.subr.mxu0 0.0
        %2042 = vmatpush1.msra.mxu0 0.0
        %2043 = vmatprep.subr.mxu0 0.0
        %2044 = vmatpush1.msra.mxu0 0.0
        %2045 = vmatprep.subr.mxu0 0.0
        %2046 = vmatpush1.msra.mxu0 0.0
        %2047 = vmatprep.subr.mxu0 0.0
        %2048 = vmatpush1.msra.mxu0 0.0
        %2049 = vmatprep.subr.mxu0 0.0
        %2050 = vmatpush1.msra.mxu0 0.0
        %2051 = vmatprep.subr.mxu0 0.0
        %2052 = vmatpush1.msra.mxu0 0.0
        %2053 = vmatprep.subr.mxu0 0.0
        %2054 = vmatpush1.msra.mxu0 0.0
        %2055 = vmatprep.subr.mxu0 0.0
        %2056 = vmatpush1.msra.mxu0 0.0
        %2057 = vmatprep.subr.mxu0 0.0
        %2058 = vmatpush1.msra.mxu0 0.0
        %2059 = vmatprep.subr.mxu0 0.0
        %2060 = vmatpush1.msra.mxu0 0.0
        %2061 = vmatprep.subr.mxu0 0.0
        %2062 = vmatpush1.msra.mxu0 0.0
        %2063 = vmatprep.subr.mxu0 0.0
        %2064 = vmatpush1.msra.mxu0 0.0
        %2065 = vmatprep.subr.mxu0 0.0
        %2066 = vmatpush1.msra.mxu0 0.0
        %2067 = vmatprep.subr.mxu0 0.0
        %2068 = vmatpush1.msra.mxu0 0.0
        %2069 = vmatprep.subr.mxu0 0.0
        %2070 = vmatpush1.msra.mxu0 0.0
        %2071 = vmatprep.subr.mxu0 0.0
        %2072 = vmatpush1.msra.mxu0 0.0
        %2073 = vmatprep.subr.mxu0 0.0
        %2074 = vmatpush1.msra.mxu0 0.0
        %2075 = vmatprep.subr.mxu0 0.0
        %2076 = vmatpush1.msra.mxu0 0.0
        %2077 = vmatprep.subr.mxu0 0.0
        %2078 = vmatpush1.msra.mxu0 0.0
        %2079 = vmatprep.subr.mxu0 0.0
        %2080 = vmatpush1.msra.mxu0 0.0
        %2081 = vmatprep.subr.mxu0 0.0
        %2082 = vmatpush1.msra.mxu0 0.0
        %2083 = vmatprep.subr.mxu0 0.0
        %2084 = vmatpush1.msra.mxu0 0.0
        %2085 = vmatprep.mubr.f32.mxu0 0.0
        %2086 = vmatmul.mubr.f32.gmra.mrb[0].mxu0 %v2019
        %v2087 = vpop.f32.mrb[0].mxu0
        %v2088 = vadd.f32 0.0, %v2087
        %v2089 = vpop.f32.mrb[0].mxu0
        %2090 = vdwg.mxu0
        %v2091 = vld [vmem:[%s10] sm:$0xff]
        %v2092 = vld [vmem:[%s10 + $0x8] sm:$0xff]
        %v2093 = vld [vmem:[%s10 + $0x10] sm:$0xff]
        %v2094 = vld [vmem:[%s10 + $0x18] sm:$0xff]
        %2095 = vmatprep.subr.mxu0 0.0
        %2096 = vmatpush1.msra.mxu0 %v2091
        %2097 = vmatprep.subr.mxu0 0.0
        %2098 = vmatpush1.msra.mxu0 %v2092
        %2099 = vmatprep.subr.mxu0 0.0
        %2100 = vmatpush1.msra.mxu0 %v2093
        %2101 = vmatprep.subr.mxu0 0.0
        %2102 = vmatpush1.msra.mxu0 %v2094
        %2103 = vmatprep.subr.mxu0 0.0
        %2104 = vmatpush1.msra.mxu0 0.0
        %2105 = vmatprep.subr.mxu0 0.0
        %2106 = vmatpush1.msra.mxu0 0.0
        %2107 = vmatprep.subr.mxu0 0.0
        %2108 = vmatpush1.msra.mxu0 0.0
        %2109 = vmatprep.subr.mxu0 0.0
        %2110 = vmatpush1.msra.mxu0 0.0
        %2111 = vmatprep.subr.mxu0 0.0
        %2112 = vmatpush1.msra.mxu0 0.0
        %2113 = vmatprep.subr.mxu0 0.0
        %2114 = vmatpush1.msra.mxu0 0.0
        %2115 = vmatprep.subr.mxu0 0.0
        %2116 = vmatpush1.msra.mxu0 0.0
        %2117 = vmatprep.subr.mxu0 0.0
        %2118 = vmatpush1.msra.mxu0 0.0
        %2119 = vmatprep.subr.mxu0 0.0
        %2120 = vmatpush1.msra.mxu0 0.0
        %2121 = vmatprep.subr.mxu0 0.0
        %2122 = vmatpush1.msra.mxu0 0.0
        %2123 = vmatprep.subr.mxu0 0.0
        %2124 = vmatpush1.msra.mxu0 0.0
        %2125 = vmatprep.subr.mxu0 0.0
        %2126 = vmatpush1.msra.mxu0 0.0
        %2127 = vmatprep.subr.mxu0 0.0
        %2128 = vmatpush1.msra.mxu0 0.0
        %2129 = vmatprep.subr.mxu0 0.0
        %2130 = vmatpush1.msra.mxu0 0.0
        %2131 = vmatprep.subr.mxu0 0.0
        %2132 = vmatpush1.msra.mxu0 0.0
        %2133 = vmatprep.subr.mxu0 0.0
        %2134 = vmatpush1.msra.mxu0 0.0
        %2135 = vmatprep.subr.mxu0 0.0
        %2136 = vmatpush1.msra.mxu0 0.0
        %2137 = vmatprep.subr.mxu0 0.0
        %2138 = vmatpush1.msra.mxu0 0.0
        %2139 = vmatprep.subr.mxu0 0.0
        %2140 = vmatpush1.msra.mxu0 0.0
        %2141 = vmatprep.subr.mxu0 0.0
        %2142 = vmatpush1.msra.mxu0 0.0
        %2143 = vmatprep.subr.mxu0 0.0
        %2144 = vmatpush1.msra.mxu0 0.0
        %2145 = vmatprep.subr.mxu0 0.0
        %2146 = vmatpush1.msra.mxu0 0.0
        %2147 = vmatprep.subr.mxu0 0.0
        %2148 = vmatpush1.msra.mxu0 0.0
        %2149 = vmatprep.subr.mxu0 0.0
        %2150 = vmatpush1.msra.mxu0 0.0
        %2151 = vmatprep.subr.mxu0 0.0
        %2152 = vmatpush1.msra.mxu0 0.0
        %2153 = vmatprep.subr.mxu0 0.0
        %2154 = vmatpush1.msra.mxu0 0.0
        %2155 = vmatprep.subr.mxu0 0.0
        %2156 = vmatpush1.msra.mxu0 0.0
        %2157 = vmatprep.subr.mxu0 0.0
        %2158 = vmatpush1.msra.mxu0 0.0
        %2159 = vmatprep.mubr.f32.mxu0 0.0
        %2160 = vmatmul.mubr.f32.gmra.mrb[0].mxu0 %v2019
        %v2161 = vpop.f32.mrb[0].mxu0
        %v2162 = vadd.f32 0.0, %v2161
        %v2163 = vpop.f32.mrb[0].mxu0
        %2164 = vdwg.mxu0
        %v2165 = vxor.u32 %v2088, 2147483648
        %v2166 = vmul.f32 %v2165, 1.442695
        %v2167 = vpow.pop %v2166
        %v2168 = vadd.f32 %v2167, 1.0
        %v2169 = vrcp.pop %v2168
        %v2170 = vmul.f32 1.0, %v2169
        %v2171 = vmul.f32 %v2088, %v2170
        %v2172 = vmul.f32 %v2171, %v2162
        %v2173 = vld [vmem:[%s11] sm:$0xff]
        %v2174 = vld [vmem:[%s11 + $0x8] sm:$0xff]
        %v2175 = vld [vmem:[%s11 + $0x10] sm:$0xff]
        %v2176 = vld [vmem:[%s11 + $0x18] sm:$0xff]
        %v2177 = vld [vmem:[%s11 + $0x20] sm:$0xff]
        %v2178 = vld [vmem:[%s11 + $0x28] sm:$0xff]
        %v2179 = vld [vmem:[%s11 + $0x30] sm:$0xff]
        %v2180 = vld [vmem:[%s11 + $0x38] sm:$0xff]
        %vm2181 = vcmask 523264
        %v2183 = vsel %vm2181, %v2172, 0
        %2185 = vmatprep.subr.mxu0 0.0
        %2186 = vmatpush1.msra.mxu0 %v2173
        %2187 = vmatprep.subr.mxu0 0.0
        %2188 = vmatpush1.msra.mxu0 %v2174
        %2189 = vmatprep.subr.mxu0 0.0
        %2190 = vmatpush1.msra.mxu0 %v2175
        %2191 = vmatprep.subr.mxu0 0.0
        %2192 = vmatpush1.msra.mxu0 %v2176
        %2193 = vmatprep.subr.mxu0 0.0
        %2194 = vmatpush1.msra.mxu0 %v2177
        %2195 = vmatprep.subr.mxu0 0.0
        %2196 = vmatpush1.msra.mxu0 %v2178
        %2197 = vmatprep.subr.mxu0 0.0
        %2198 = vmatpush1.msra.mxu0 %v2179
        %2199 = vmatprep.subr.mxu0 0.0
        %2200 = vmatpush1.msra.mxu0 %v2180
        %2201 = vmatprep.subr.mxu0 0.0
        %2202 = vmatpush1.msra.mxu0 0.0
        %2203 = vmatprep.subr.mxu0 0.0
        %2204 = vmatpush1.msra.mxu0 0.0
        %2205 = vmatprep.subr.mxu0 0.0
        %2206 = vmatpush1.msra.mxu0 0.0
        %2207 = vmatprep.subr.mxu0 0.0
        %2208 = vmatpush1.msra.mxu0 0.0
        %2209 = vmatprep.subr.mxu0 0.0
        %2210 = vmatpush1.msra.mxu0 0.0
        %2211 = vmatprep.subr.mxu0 0.0
        %2212 = vmatpush1.msra.mxu0 0.0
        %2213 = vmatprep.subr.mxu0 0.0
        %2214 = vmatpush1.msra.mxu0 0.0
        %2215 = vmatprep.subr.mxu0 0.0
        %2216 = vmatpush1.msra.mxu0 0.0
        %2217 = vmatprep.subr.mxu0 0.0
        %2218 = vmatpush1.msra.mxu0 0.0
        %2219 = vmatprep.subr.mxu0 0.0
        %2220 = vmatpush1.msra.mxu0 0.0
        %2221 = vmatprep.subr.mxu0 0.0
        %2222 = vmatpush1.msra.mxu0 0.0
        %2223 = vmatprep.subr.mxu0 0.0
        %2224 = vmatpush1.msra.mxu0 0.0
        %2225 = vmatprep.subr.mxu0 0.0
        %2226 = vmatpush1.msra.mxu0 0.0
        %2227 = vmatprep.subr.mxu0 0.0
        %2228 = vmatpush1.msra.mxu0 0.0
        %2229 = vmatprep.subr.mxu0 0.0
        %2230 = vmatpush1.msra.mxu0 0.0
        %2231 = vmatprep.subr.mxu0 0.0
        %2232 = vmatpush1.msra.mxu0 0.0
        %2233 = vmatprep.subr.mxu0 0.0
        %2234 = vmatpush1.msra.mxu0 0.0
        %2235 = vmatprep.subr.mxu0 0.0
        %2236 = vmatpush1.msra.mxu0 0.0
        %2237 = vmatprep.subr.mxu0 0.0
        %2238 = vmatpush1.msra.mxu0 0.0
        %2239 = vmatprep.subr.mxu0 0.0
        %2240 = vmatpush1.msra.mxu0 0.0
        %2241 = vmatprep.subr.mxu0 0.0
        %2242 = vmatpush1.msra.mxu0 0.0
        %2243 = vmatprep.subr.mxu0 0.0
        %2244 = vmatpush1.msra.mxu0 0.0
        %2245 = vmatprep.subr.mxu0 0.0
        %2246 = vmatpush1.msra.mxu0 0.0
        %2247 = vmatprep.subr.mxu0 0.0
        %2248 = vmatpush1.msra.mxu0 0.0
        %2249 = vmatprep.mubr.f32.mxu0 0.0
        %2250 = vmatmul.mubr.f32.gmra.mrb[0].mxu0 %v2183
        %v2251 = vpop.f32.mrb[0].mxu0
        %v2252 = vadd.f32 0.0, %v2251
        %v2253 = vpop.f32.mrb[0].mxu0
        %2254 = vdwg.mxu0
        %v2255 = vadd.f32 %v1997, %v2252
        %2256 = vst.msk [vmem:[%s539] sm:$0xff] %vm547, %v2255
        %s2257 = sand.u32 %s401, 1
        %s2258 = scalar_lea.sflag [#allocation3], %s2257
        %s2259 = sand.u32 %s401, 1
        %s2260 = smul.addr %s2259, 8
        %s2261 = scalar_lea.vmem [#allocation2], %s2260
        // Predicated region
        $region89: #{tpu_custom_call.1} parent=87 // pred_check
          %p2262 = pneg %p411
        $region90: #{tpu_custom_call.1} parent=87 // pred_check_branch
          %2264 = sbr.rel (%p2262) target = $region92
        $region91: #{tpu_custom_call.1} parent=87 // pred_region
          %s2266 = ssub.s32 128, 128
          %2267 = vsyncadd %s2258, %s2266
          %s2268 = smul.addr %s31, 128
          %s2269 = scalar_lea.hbm %s17, %s2268
          %s2271 = sshll.u32 %s2261, 4
          %s2272 = int_to_ptr.vmem [resolvable:$true] %s2271
          %2274 = dma.vmem_to_hbm [thread:$0]  %s2272, 128, %s2269, %s2258
        $region92: #{tpu_custom_call.1} parent=87 // pred_fallthru
          _
      $region88: #{tpu_custom_call.1} parent=5 // pred_fallthru
        _
      %p2275 = scmp.le.s32.totalorder 2, %s26
      // Predicated region
      $region93: #{tpu_custom_call.1} parent=5 // pred_check
        %p2276 = pneg %p2275
      $region94: #{tpu_custom_call.1} parent=5 // pred_check_branch
        %2278 = sbr.rel (%p2276) target = $region96
      $region95: #{tpu_custom_call.1} parent=5 // pred_region
        %s2279 = ssub.s32 %s26, 2
        // Predicated region
        $region97: #{tpu_custom_call.1} parent=95 // pred_check
          %p2280 = pneg %p417
        $region98: #{tpu_custom_call.1} parent=95 // pred_check_branch
          %2282 = sbr.rel (%p2280) target = $region100
        $region99: #{tpu_custom_call.1} parent=95 // pred_region
          %s2283 = sand.u32 %s402, 1
          %s2284 = scalar_lea.sflag [#allocation3], %s2283
          %s2285 = sand.u32 %s402, 1
          %s2286 = smul.addr %s2285, 8
          %s2287 = scalar_lea.vmem [#allocation2], %s2286
          %2288 = dma.done %s2284, 128
        $region100: #{tpu_custom_call.1} parent=95 // pred_fallthru
          _
      $region96: #{tpu_custom_call.1} parent=5 // pred_fallthru
        _
    $region6: #{tpu_custom_call.1} parent=1 // loop_footer
      %s30 = sadd.s32 1, %s26
    $region7: #{tpu_custom_call.1} parent=1 // loop_footer_branch
      %25 = sbr.rel target = $region3
    $region8: #{tpu_custom_call.1} parent=1 // loop_exit
      _
    %2289 = vsyncpa [#allocation3], 1
    %s2290 = scalar_lea.sflag [#allocation3], 1
    %2291 = vsyncpa %s2290, 1

</llo_original>
